<compile_context>
chip_gen: v7x
topology: tpu7x:2x2x1
jax: 0.10.0
libtpu: 0.0.40
codegen_flags: <defaults>
</compile_context>

<pallas_src>
import functools

import jax
import jax.numpy as jnp
from jax.experimental import pallas as pl
from jax.experimental.pallas import tpu as pltpu

_LANE = 128  # TPU vreg lane width


# ------------------------------ step schedule --------------------------------
def _build_plan(K1, K2, Km):
    """Static per-grid-step schedule.

    Each step performs at most ONE L-matmul (one Chebyshev recurrence term of
    one phase) plus optional row-local finalizations.  A finalization must sit
    in a step strictly before the first L-matmul that consumes its result,
    because L@h needs ALL rows of h.
    """
    Kx = max(K1, Km)  # X terms shared by layer 1 and the skip branch of conv_mix
    plan = [dict(lmm=("X", k)) for k in range(1, Kx)]
    fin1_done = False
    fin2_done = False

    if K2 > 1:
        if plan:
            plan[-1]["fin1"] = True
        else:
            plan.append(dict(lmm=None, fin1=True))
        fin1_done = True
        plan += [dict(lmm=("H1", k)) for k in range(1, K2)]

    if Km > 1:
        if not fin1_done:
            # K2 == 1: h2 is row-local from h1, finalize both before L@h2 steps.
            if plan:
                plan[-1]["fin1"] = True
            else:  # unreachable: Km > 1 => Kx > 1 => plan non-empty
                plan.append(dict(lmm=None, fin1=True))
            fin1_done = True
        plan[-1]["fin2"] = True
        fin2_done = True
        plan += [dict(lmm=("H2", k)) for k in range(1, Km)]

    if not plan:
        plan.append(dict(lmm=None))
    if not fin1_done:
        plan[-1]["fin1"] = True
    if not fin2_done:
        plan[-1]["fin2"] = True
    return plan, Kx


# ----------------------------- fused Pallas kernel ---------------------------
def _kipfnet_kernel(l_ref, x_ref, w1_ref, b1_ref, w2_ref, b2_ref,
                    wmh_ref, wmx_ref, bm_ref, o_ref,
                    zbuf, h1_ref, h2_ref, acc1_ref, acc2_ref,
                    *, plan, dims):
    """KipfNetd2 forward, gridded over (recurrence step, L row-block).

    l_ref  : [TM, Np]        bf16  streamed row-block of L_hat
    x_ref  : [Np, Fp]        bf16  node features (resident)
    w*_ref : [K, Fin_p, Fout_p]  bf16 Chebyshev weights (resident)
    b*_ref : [1, Fout_p]     f32   biases
    o_ref  : [Np, Cp]        f32   resident output accumulator (flushed once)
    zbuf   : [2, Np, Wz]     bf16  Chebyshev carries (ping-pong)
    h1/h2  : [Np, H*p]       bf16  layer activations
    acc1/2 : [Np, H*p]       f32   per-layer pre-activation accumulators
    """
    TM, Fp, H1p, H2p, K1, K2, Km, Kx = dims
    s = pl.program_id(0)
    i = pl.program_id(1)
    r0 = pl.multiple_of(i * TM, TM)
    rows = pl.ds(r0, TM)
    f32 = jnp.float32
    bf16 = jnp.bfloat16

    # ---- step 0: row-local T_0 contributions (layer 1 + skip branch of mix) ----
    @pl.when(s == 0)
    def _init():
        xi = x_ref[rows, :]
        acc1_ref[rows, :] = jnp.dot(xi, w1_ref[0], preferred_element_type=f32)
        o_ref[rows, :] = (jnp.dot(xi, wmx_ref[0], preferred_element_type=f32)
                          + bm_ref[...])

    def phase_src(phase):
        if phase == "X":
            return x_ref, Fp, Kx
        if phase == "H1":
            return h1_ref, H1p, K2
        return h2_ref, H2p, Km

    for idx, st in enumerate(plan):
        @pl.when(s == idx)
        def _step(st=st):
            lmm = st.get("lmm")
            if lmm is not None:
                phase, k = lmm
                src_ref, W, Kph = phase_src(phase)
                Lb = l_ref[...]                                   # [TM, Np] bf16
                if k == 1:
                    z = jnp.dot(Lb, src_ref[:, 0:W], preferred_element_type=f32)
                else:
                    zprev = zbuf.at[(k - 1) % 2]
                    z = 2.0 * jnp.dot(Lb, zprev[:, 0:W], preferred_element_type=f32)
                    if k == 2:
                        z = z - src_ref[rows, 0:W].astype(f32)
                    else:
                        zpp = zbuf.at[k % 2]
                        z = z - zpp[rows, 0:W].astype(f32)
                zb = z.astype(bf16)
                if k < Kph - 1:   # carry needed by the next term of this phase
                    zcur = zbuf.at[k % 2]
                    zcur[rows, 0:W] = zb
                if phase == "X":
                    if k < K1:
                        acc1_ref[rows, :] += jnp.dot(zb, w1_ref[k],
                                                     preferred_element_type=f32)
                    if k < Km:     # reuse X terms for the skip branch of conv_mix
                        o_ref[rows, :] += jnp.dot(zb, wmx_ref[k],
                                                  preferred_element_type=f32)
                elif phase == "H1":
                    acc2_ref[rows, :] += jnp.dot(zb, w2_ref[k],
                                                 preferred_element_type=f32)
                else:  # "H2"
                    o_ref[rows, :] += jnp.dot(zb, wmh_ref[k],
                                              preferred_element_type=f32)

            if st.get("fin1", False):
                # TODO(synk): dropout(p=0.5) is training-only; eval forward == identity.
                h1 = jnp.maximum(acc1_ref[rows, :] + b1_ref[...], 0.0).astype(bf16)
                h1_ref[rows, :] = h1
                acc2_ref[rows, :] = jnp.dot(h1, w2_ref[0], preferred_element_type=f32)

            if st.get("fin2", False):
                h2 = jnp.maximum(acc2_ref[rows, :] + b2_ref[...], 0.0).astype(bf16)
                if Km > 1:
                    h2_ref[rows, :] = h2
                o_ref[rows, :] += jnp.dot(h2, wmh_ref[0], preferred_element_type=f32)


# --------------------------------- prep helpers -------------------------------
def build_scaled_laplacian(edge_index, num_nodes):
    """L_hat = 2*L/lambda_max - I with lambda_max=2  =>  L_hat = -D^{-1/2} A D^{-1/2}."""
    row, col = edge_index[0], edge_index[1]
    w = jnp.where(row != col, 1.0, 0.0)  # ChebConv removes self-loops first
    A = jnp.zeros((num_nodes, num_nodes), jnp.float32).at[row, col].add(w)
    deg = A.sum(axis=1)
    dinv = jnp.where(deg > 0, 1.0 / jnp.sqrt(deg), 0.0)  # inf -> 0 masking
    return -(dinv[:, None] * A * dinv[None, :])


def _ceil_to(v, m):
    return (v + m - 1) // m * m


def _pad2(a, rows, cols):
    return jnp.pad(a, ((0, rows - a.shape[0]), (0, cols - a.shape[1])))


def _prep_weight(W, fin_pad, fout_pad):
    K, fin, fout = W.shape
    return jnp.pad(W, ((0, 0), (0, fin_pad - fin), (0, fout_pad - fout))).astype(jnp.bfloat16)


def _prep_bias(b, fout_pad):
    return jnp.pad(b, (0, fout_pad - b.shape[0])).reshape(1, fout_pad).astype(jnp.float32)


def _vmem_plan(Np, Fp, H1p, H2p, Cp, K1, K2, Km):
    """Pick the L row-tile TM and a generation-aware vmem_limit_bytes."""
    try:
        cap = int(pltpu.get_tpu_info().vmem_capacity_bytes)
    except Exception:  # pragma: no cover - conservative fallback (v7x per-TC)
        cap = 64 * 1024 * 1024
    Wz = max(Fp, H1p, H2p)
    resident = (
        2 * Np * Fp * 2                                              # X (x2 buffers)
        + 2 * 2 * (K1 * Fp * H1p + K2 * H1p * H2p + Km * (H2p + Fp) * Cp)  # weights
        + 2 * 4 * (H1p + H2p + Cp)                                   # biases
        + 2 * Np * Cp * 4                                            # resident out acc
        + 2 * Np * Wz * 2                                            # Chebyshev carries
        + Np * (H1p + H2p) * 2                                       # h1 / h2
        + Np * (H1p + H2p) * 4                                       # acc1 / acc2
    )
    budget = int(cap * 0.9) - (8 << 20)
    tm = _LANE
    for cand in (Np, 1024, 512, 256, _LANE):
        if cand <= Np and Np % cand == 0 and resident + 2 * cand * Np * 2 <= budget:
            tm = cand                      # TM == Np -> L is effectively resident
            break
    # TODO(synk): for graphs where even 128-row L tiles overflow the budget,
    # also tile L's contraction (column) dim and carry partial sums.
    need = resident + 2 * tm * Np * 2
    limit = min(max(need + (8 << 20), 32 << 20), max(cap - (2 << 20), 32 << 20))
    return tm, int(limit)


# --------------------------------- public API ---------------------------------
def make_kipfnetd2(params, edge_index, num_nodes):
    """Build L_hat / padded weights ONCE; return a jitted forward(x) closure."""
    N = int(num_nodes)
    K1, F, H1 = params["W1"].shape
    K2, _, H2 = params["W2"].shape
    Km, mix_in, C = params["Wm"].shape
    assert mix_in == H2 + F

    Np = _ceil_to(max(N, _LANE), _LANE)           # lane-dense rows AND contraction dim
    Fp, H1p, H2p, Cp = (_ceil_to(d, _LANE) for d in (F, H1, H2, C))
    Wz = max(Fp, H1p, H2p)

    # ---- per-graph / per-params prep, hoisted out of the per-forward path ----
    L_hat = build_scaled_laplacian(edge_index, N)
    Lp = _pad2(L_hat, Np, Np).astype(jnp.bfloat16)
    w1 = _prep_weight(params["W1"], Fp, H1p)
    w2 = _prep_weight(params["W2"], H1p, H2p)
    wmh = _prep_weight(params["Wm"][:, :H2, :], H2p, Cp)   # rows acting on h2
    wmx = _prep_weight(params["Wm"][:, H2:, :], Fp, Cp)    # rows acting on skip x
    b1 = _prep_bias(params["b1"], H1p)
    b2 = _prep_bias(params["b2"], H2p)
    bm = _prep_bias(params["bm"], Cp)

    plan, Kx = _build_plan(K1, K2, Km)
    TM, vmem_limit = _vmem_plan(Np, Fp, H1p, H2p, Cp, K1, K2, Km)
    grid = (len(plan), Np // TM)

    kernel = functools.partial(
        _kipfnet_kernel, plan=plan,
        dims=(TM, Fp, H1p, H2p, K1, K2, Km, Kx))

    call = pl.pallas_call(
        kernel,
        out_shape=jax.ShapeDtypeStruct((Np, Cp), jnp.float32),
        grid=grid,
        in_specs=[
            pl.BlockSpec((TM, Np), lambda s, i: (i, 0)),           # L row-block stream
            pl.BlockSpec((Np, Fp), lambda s, i: (0, 0)),           # X resident
            pl.BlockSpec((K1, Fp, H1p), lambda s, i: (0, 0, 0)),   # W1
            pl.BlockSpec((1, H1p), lambda s, i: (0, 0)),           # b1
            pl.BlockSpec((K2, H1p, H2p), lambda s, i: (0, 0, 0)),  # W2
            pl.BlockSpec((1, H2p), lambda s, i: (0, 0)),           # b2
            pl.BlockSpec((Km, H2p, Cp), lambda s, i: (0, 0, 0)),   # Wm (h2 rows)
            pl.BlockSpec((Km, Fp, Cp), lambda s, i: (0, 0, 0)),    # Wm (skip-x rows)
            pl.BlockSpec((1, Cp), lambda s, i: (0, 0)),            # bm
        ],
        out_specs=pl.BlockSpec((Np, Cp), lambda s, i: (0, 0)),     # resident accumulator
        scratch_shapes=[
            pltpu.VMEM((2, Np, Wz), jnp.bfloat16),   # Chebyshev carries (ping-pong)
            pltpu.VMEM((Np, H1p), jnp.bfloat16),     # h1
            pltpu.VMEM((Np, H2p), jnp.bfloat16),     # h2
            pltpu.VMEM((Np, H1p), jnp.float32),      # layer-1 accumulator
            pltpu.VMEM((Np, H2p), jnp.float32),      # layer-2 accumulator
        ],
        compiler_params=pltpu.CompilerParams(
            # Both axes carry VMEM state (carries / resident out accumulator),
            # so both must stay "arbitrary" on a single TensorCore.
            # TODO(synk): split row-blocks across v7x's 2 TensorCores (needs
            # shared/CMEM carries or a per-layer two-launch split).
            dimension_semantics=("arbitrary", "arbitrary"),
            vmem_limit_bytes=vmem_limit,
        ),
    )

    @jax.jit
    def _forward(x, Lp, w1, b1, w2, b2, wmh, wmx, bm):
        xp = _pad2(x.astype(jnp.float32), Np, Fp).astype(jnp.bfloat16)
        out = call(Lp, xp, w1, b1, w2, b2, wmh, wmx, bm)
        return out[:N, :C]

    def apply_fn(x):
        return _forward(x, Lp, w1, b1, w2, b2, wmh, wmx, bm)

    return apply_fn


def kipfnetd2_forward(params, x, edge_index):
    """Convenience one-shot wrapper (prefer make_kipfnetd2 to cache graph prep)."""
    return make_kipfnetd2(params, edge_index, x.shape[0])(x)


# ------------------- pure-JAX reference (bf16-matched math) ------------------
def _ref_cheb(L, X, W, b, apply_relu):
    Lb = L.astype(jnp.bfloat16)
    Xb = X.astype(jnp.bfloat16)
    Wb = W.astype(jnp.bfloat16)
    K = W.shape[0]
    zs = [Xb]
    if K > 1:
        z1 = jnp.dot(Lb, Xb, preferred_element_type=jnp.float32).astype(jnp.bfloat16)
        zs.append(z1)
        zp2, zp1 = Xb, z1
        for _ in range(2, K):
            zk = (2.0 * jnp.dot(Lb, zp1, preferred_element_type=jnp.float32)
                  - zp2.astype(jnp.float32)).astype(jnp.bfloat16)
            zs.append(zk)
            zp2, zp1 = zp1, zk
    acc = sum(jnp.dot(zs[k], Wb[k], preferred_element_type=jnp.float32) for k in range(K))
    acc = acc + b[None, :]
    return jnp.maximum(acc, 0.0) if apply_relu else acc


def _ref_forward(params, x, edge_index):
    L_hat = build_scaled_laplacian(edge_index, x.shape[0])
    h = _ref_cheb(L_hat, x, params["W1"], params["b1"], True)
    h = _ref_cheb(L_hat, h, params["W2"], params["b2"], True)
    h = jnp.concatenate([h, x], axis=1)
    return _ref_cheb(L_hat, h, params["Wm"], params["bm"], False)


if __name__ == "__main__":
    # Small shapes consistent with the module constructor.
    N = 32                # graph nodes
    num_features = 16
    nh1, nh2 = 8, 8
    num_classes = 4
    K, K_mix = 2, 1

    key = jax.random.PRNGKey(0)
    kx, k1, k2, km = jax.random.split(key, 4)

    # data.x : [N, num_features]
    x = jax.random.normal(kx, (N, num_features), dtype=jnp.float32)

    # edge_index : [2, E] — bidirectional ring graph (deterministic).
    src = jnp.arange(N, dtype=jnp.int32)
    dst = (src + 1) % N
    edge_index = jnp.stack(
        [jnp.concatenate([src, dst]), jnp.concatenate([dst, src])], axis=0
    )

    # Deterministic synthetic parameters (glorot-ish scale; small non-zero biases).
    params = {
        "W1": 0.3 * jax.random.normal(k1, (K, num_features, nh1), dtype=jnp.float32),
        "b1": jnp.full((nh1,), 0.01, dtype=jnp.float32),
        "W2": 0.3 * jax.random.normal(k2, (K, nh1, nh2), dtype=jnp.float32),
        "b2": jnp.full((nh2,), 0.01, dtype=jnp.float32),
        "Wm": 0.3 * jax.random.normal(km, (K_mix, nh2 + num_features, num_classes),
                                      dtype=jnp.float32),
        "bm": jnp.full((num_classes,), 0.01, dtype=jnp.float32),
    }

    fwd = make_kipfnetd2(params, edge_index, N)   # graph/weight prep hoisted here
    out = jax.block_until_ready(fwd(x))

    ref = _ref_forward(params, x, edge_index)
    assert out.shape == (N, num_classes)
    assert jnp.allclose(out, ref, atol=2e-3, rtol=2e-3), "mismatch vs JAX reference"

    print("KERNEL_OK")
</pallas_src>

<mosaic_0001>
module attributes {stable_mosaic.version = 11 : i64} {
  func.func @_kipfnet_kernel(%arg0: i32, %arg1: i32, %arg2: memref<128x128xbf16, #tpu.memory_space<vmem>>, %arg3: memref<128x128xbf16, #tpu.memory_space<vmem>>, %arg4: memref<2x128x128xbf16, #tpu.memory_space<vmem>>, %arg5: memref<1x128xf32, #tpu.memory_space<vmem>>, %arg6: memref<2x128x128xbf16, #tpu.memory_space<vmem>>, %arg7: memref<1x128xf32, #tpu.memory_space<vmem>>, %arg8: memref<1x128x128xbf16, #tpu.memory_space<vmem>>, %arg9: memref<1x128x128xbf16, #tpu.memory_space<vmem>>, %arg10: memref<1x128xf32, #tpu.memory_space<vmem>>, %arg11: memref<128x128xf32, #tpu.memory_space<vmem>>, %arg12: memref<2x128x128xbf16, #tpu.memory_space<vmem>>, %arg13: memref<128x128xbf16, #tpu.memory_space<vmem>>, %arg14: memref<128x128xbf16, #tpu.memory_space<vmem>>, %arg15: memref<128x128xf32, #tpu.memory_space<vmem>>, %arg16: memref<128x128xf32, #tpu.memory_space<vmem>>) attributes {dimension_semantics = [#tpu.dimension_semantics<arbitrary>, #tpu.dimension_semantics<arbitrary>], iteration_bounds = array<i64: 2, 1>, scalar_prefetch = 0 : i64, scratch_operands = 5 : i64, tpu.core_type = #tpu.core_type<tc>, window_params = [{transform_indices = @transform_0, window_bounds = array<i64: 128, 128>}, {pipeline_mode = #tpu.pipeline_mode<synchronous>, transform_indices = @transform_1, window_bounds = array<i64: 128, 128>}, {pipeline_mode = #tpu.pipeline_mode<synchronous>, transform_indices = @transform_2, window_bounds = array<i64: 2, 128, 128>}, {pipeline_mode = #tpu.pipeline_mode<synchronous>, transform_indices = @transform_3, window_bounds = array<i64: 1, 128>}, {pipeline_mode = #tpu.pipeline_mode<synchronous>, transform_indices = @transform_4, window_bounds = array<i64: 2, 128, 128>}, {pipeline_mode = #tpu.pipeline_mode<synchronous>, transform_indices = @transform_5, window_bounds = array<i64: 1, 128>}, {pipeline_mode = #tpu.pipeline_mode<synchronous>, transform_indices = @transform_6, window_bounds = array<i64: 1, 128, 128>}, {pipeline_mode = #tpu.pipeline_mode<synchronous>, transform_indices = @transform_7, window_bounds = array<i64: 1, 128, 128>}, {pipeline_mode = #tpu.pipeline_mode<synchronous>, transform_indices = @transform_8, window_bounds = array<i64: 1, 128>}, {pipeline_mode = #tpu.pipeline_mode<synchronous>, transform_indices = @transform_9, window_bounds = array<i64: 128, 128>}]} {
    %c128_i32 = arith.constant 128 : i32
    %0 = arith.muli %arg1, %c128_i32 : i32
    %1 = tpu.assume_multiple %0, 128 : i32
    %c0_i32 = arith.constant 0 : i32
    %2 = arith.cmpi eq, %arg0, %c0_i32 : i32
    %3 = arith.extui %2 : i1 to i32
    %c0_i32_0 = arith.constant 0 : i32
    %4 = arith.cmpi ne, %3, %c0_i32_0 : i32
    scf.if %4 {
      %11 = arith.index_cast %1 : i32 to index
      %c0 = arith.constant 0 : index
      %12 = vector.load %arg3[%11, %c0] : memref<128x128xbf16, #tpu.memory_space<vmem>>, vector<128x128xbf16>
      %c0_4 = arith.constant 0 : index
      %c0_5 = arith.constant 0 : index
      %c0_6 = arith.constant 0 : index
      %13 = vector.load %arg4[%c0_4, %c0_5, %c0_6] : memref<2x128x128xbf16, #tpu.memory_space<vmem>>, vector<1x128x128xbf16>
      %14 = vector.shape_cast %13 : vector<1x128x128xbf16> to vector<128x128xbf16>
      %cst = arith.constant dense<0.000000e+00> : vector<128x128xf32>
      %15 = tpu.matmul %12, %14, %cst {dimension_numbers = #tpu.dot_dimension_numbers<[1], [0], [0], [1], [0, 0, 1, 1], [], []>} : vector<128x128xbf16>, vector<128x128xbf16>, vector<128x128xf32> -> vector<128x128xf32>
      %16 = arith.index_cast %1 : i32 to index
      %c0_7 = arith.constant 0 : index
      %17 = vector.load %arg15[%16, %c0_7] : memref<128x128xf32, #tpu.memory_space<vmem>>, vector<128x128xf32>
      tpu.vector_store %arg15[%16, %c0_7], %15 {strides = array<i32>} : memref<128x128xf32, #tpu.memory_space<vmem>>, vector<128x128xf32>,
      %c0_8 = arith.constant 0 : index
      %c0_9 = arith.constant 0 : index
      %c0_10 = arith.constant 0 : index
      %18 = vector.load %arg9[%c0_8, %c0_9, %c0_10] : memref<1x128x128xbf16, #tpu.memory_space<vmem>>, vector<1x128x128xbf16>
      %19 = vector.shape_cast %18 : vector<1x128x128xbf16> to vector<128x128xbf16>
      %cst_11 = arith.constant dense<0.000000e+00> : vector<128x128xf32>
      %20 = tpu.matmul %12, %19, %cst_11 {dimension_numbers = #tpu.dot_dimension_numbers<[1], [0], [0], [1], [0, 0, 1, 1], [], []>} : vector<128x128xbf16>, vector<128x128xbf16>, vector<128x128xf32> -> vector<128x128xf32>
      %c0_12 = arith.constant 0 : index
      %c0_13 = arith.constant 0 : index
      %21 = vector.load %arg10[%c0_12, %c0_13] : memref<1x128xf32, #tpu.memory_space<vmem>>, vector<1x128xf32>
      %22 = vector.broadcast %21 : vector<1x128xf32> to vector<128x128xf32>
      %23 = arith.addf %20, %22 : vector<128x128xf32>
      %24 = arith.index_cast %1 : i32 to index
      %c0_14 = arith.constant 0 : index
      %25 = vector.load %arg11[%24, %c0_14] : memref<128x128xf32, #tpu.memory_space<vmem>>, vector<128x128xf32>
      tpu.vector_store %arg11[%24, %c0_14], %23 {strides = array<i32>} : memref<128x128xf32, #tpu.memory_space<vmem>>, vector<128x128xf32>,
    } else {
    }
    %c0_i32_1 = arith.constant 0 : i32
    %5 = arith.cmpi eq, %arg0, %c0_i32_1 : i32
    %6 = arith.extui %5 : i1 to i32
    %c0_i32_2 = arith.constant 0 : i32
    %7 = arith.cmpi ne, %6, %c0_i32_2 : i32
    scf.if %7 {
      %c0 = arith.constant 0 : index
      %c0_4 = arith.constant 0 : index
      %11 = vector.load %arg2[%c0, %c0_4] : memref<128x128xbf16, #tpu.memory_space<vmem>>, vector<128x128xbf16>
      %c0_5 = arith.constant 0 : index
      %c0_6 = arith.constant 0 : index
      %12 = vector.load %arg3[%c0_5, %c0_6] : memref<128x128xbf16, #tpu.memory_space<vmem>>, vector<128x128xbf16>
      %cst = arith.constant dense<0.000000e+00> : vector<128x128xf32>
      %13 = tpu.matmul %11, %12, %cst {dimension_numbers = #tpu.dot_dimension_numbers<[1], [0], [0], [1], [0, 0, 1, 1], [], []>} : vector<128x128xbf16>, vector<128x128xbf16>, vector<128x128xf32> -> vector<128x128xf32>
      %14 = arith.truncf %13 : vector<128x128xf32> to vector<128x128xbf16>
      %15 = arith.index_cast %1 : i32 to index
      %c0_7 = arith.constant 0 : index
      %16 = vector.load %arg15[%15, %c0_7] : memref<128x128xf32, #tpu.memory_space<vmem>>, vector<128x128xf32>
      %c1 = arith.constant 1 : index
      %c0_8 = arith.constant 0 : index
      %c0_9 = arith.constant 0 : index
      %17 = vector.load %arg4[%c1, %c0_8, %c0_9] : memref<2x128x128xbf16, #tpu.memory_space<vmem>>, vector<1x128x128xbf16>
      %18 = vector.shape_cast %17 : vector<1x128x128xbf16> to vector<128x128xbf16>
      %cst_10 = arith.constant dense<0.000000e+00> : vector<128x128xf32>
      %19 = tpu.matmul %14, %18, %cst_10 {dimension_numbers = #tpu.dot_dimension_numbers<[1], [0], [0], [1], [0, 0, 1, 1], [], []>} : vector<128x128xbf16>, vector<128x128xbf16>, vector<128x128xf32> -> vector<128x128xf32>
      %20 = arith.addf %16, %19 : vector<128x128xf32>
      %21 = arith.index_cast %1 : i32 to index
      %c0_11 = arith.constant 0 : index
      %22 = vector.load %arg15[%21, %c0_11] : memref<128x128xf32, #tpu.memory_space<vmem>>, vector<128x128xf32>
      tpu.vector_store %arg15[%21, %c0_11], %20 {strides = array<i32>} : memref<128x128xf32, #tpu.memory_space<vmem>>, vector<128x128xf32>,
      %23 = arith.index_cast %1 : i32 to index
      %c0_12 = arith.constant 0 : index
      %24 = vector.load %arg15[%23, %c0_12] : memref<128x128xf32, #tpu.memory_space<vmem>>, vector<128x128xf32>
      %c0_13 = arith.constant 0 : index
      %c0_14 = arith.constant 0 : index
      %25 = vector.load %arg5[%c0_13, %c0_14] : memref<1x128xf32, #tpu.memory_space<vmem>>, vector<1x128xf32>
      %26 = vector.broadcast %25 : vector<1x128xf32> to vector<128x128xf32>
      %27 = arith.addf %24, %26 : vector<128x128xf32>
      %cst_15 = arith.constant 0.000000e+00 : f32
      %28 = vector.broadcast %cst_15 : f32 to vector<128x128xf32>
      %29 = arith.maximumf %27, %28 : vector<128x128xf32>
      %30 = arith.truncf %29 : vector<128x128xf32> to vector<128x128xbf16>
      %31 = arith.index_cast %1 : i32 to index
      %c0_16 = arith.constant 0 : index
      %32 = vector.load %arg13[%31, %c0_16] : memref<128x128xbf16, #tpu.memory_space<vmem>>, vector<128x128xbf16>
      tpu.vector_store %arg13[%31, %c0_16], %30 {strides = array<i32>} : memref<128x128xbf16, #tpu.memory_space<vmem>>, vector<128x128xbf16>,
      %c0_17 = arith.constant 0 : index
      %c0_18 = arith.constant 0 : index
      %c0_19 = arith.constant 0 : index
      %33 = vector.load %arg6[%c0_17, %c0_18, %c0_19] : memref<2x128x128xbf16, #tpu.memory_space<vmem>>, vector<1x128x128xbf16>
      %34 = vector.shape_cast %33 : vector<1x128x128xbf16> to vector<128x128xbf16>
      %cst_20 = arith.constant dense<0.000000e+00> : vector<128x128xf32>
      %35 = tpu.matmul %30, %34, %cst_20 {dimension_numbers = #tpu.dot_dimension_numbers<[1], [0], [0], [1], [0, 0, 1, 1], [], []>} : vector<128x128xbf16>, vector<128x128xbf16>, vector<128x128xf32> -> vector<128x128xf32>
      %36 = arith.index_cast %1 : i32 to index
      %c0_21 = arith.constant 0 : index
      %37 = vector.load %arg16[%36, %c0_21] : memref<128x128xf32, #tpu.memory_space<vmem>>, vector<128x128xf32>
      tpu.vector_store %arg16[%36, %c0_21], %35 {strides = array<i32>} : memref<128x128xf32, #tpu.memory_space<vmem>>, vector<128x128xf32>,
    } else {
    }
    %c1_i32 = arith.constant 1 : i32
    %8 = arith.cmpi eq, %arg0, %c1_i32 : i32
    %9 = arith.extui %8 : i1 to i32
    %c0_i32_3 = arith.constant 0 : i32
    %10 = arith.cmpi ne, %9, %c0_i32_3 : i32
    scf.if %10 {
      %c0 = arith.constant 0 : index
      %c0_4 = arith.constant 0 : index
      %11 = vector.load %arg2[%c0, %c0_4] : memref<128x128xbf16, #tpu.memory_space<vmem>>, vector<128x128xbf16>
      %c0_5 = arith.constant 0 : index
      %c0_6 = arith.constant 0 : index
      %12 = vector.load %arg13[%c0_5, %c0_6] : memref<128x128xbf16, #tpu.memory_space<vmem>>, vector<128x128xbf16>
      %cst = arith.constant dense<0.000000e+00> : vector<128x128xf32>
      %13 = tpu.matmul %11, %12, %cst {dimension_numbers = #tpu.dot_dimension_numbers<[1], [0], [0], [1], [0, 0, 1, 1], [], []>} : vector<128x128xbf16>, vector<128x128xbf16>, vector<128x128xf32> -> vector<128x128xf32>
      %14 = arith.truncf %13 : vector<128x128xf32> to vector<128x128xbf16>
      %15 = arith.index_cast %1 : i32 to index
      %c0_7 = arith.constant 0 : index
      %16 = vector.load %arg16[%15, %c0_7] : memref<128x128xf32, #tpu.memory_space<vmem>>, vector<128x128xf32>
      %c1 = arith.constant 1 : index
      %c0_8 = arith.constant 0 : index
      %c0_9 = arith.constant 0 : index
      %17 = vector.load %arg6[%c1, %c0_8, %c0_9] : memref<2x128x128xbf16, #tpu.memory_space<vmem>>, vector<1x128x128xbf16>
      %18 = vector.shape_cast %17 : vector<1x128x128xbf16> to vector<128x128xbf16>
      %cst_10 = arith.constant dense<0.000000e+00> : vector<128x128xf32>
      %19 = tpu.matmul %14, %18, %cst_10 {dimension_numbers = #tpu.dot_dimension_numbers<[1], [0], [0], [1], [0, 0, 1, 1], [], []>} : vector<128x128xbf16>, vector<128x128xbf16>, vector<128x128xf32> -> vector<128x128xf32>
      %20 = arith.addf %16, %19 : vector<128x128xf32>
      %21 = arith.index_cast %1 : i32 to index
      %c0_11 = arith.constant 0 : index
      %22 = vector.load %arg16[%21, %c0_11] : memref<128x128xf32, #tpu.memory_space<vmem>>, vector<128x128xf32>
      tpu.vector_store %arg16[%21, %c0_11], %20 {strides = array<i32>} : memref<128x128xf32, #tpu.memory_space<vmem>>, vector<128x128xf32>,
      %23 = arith.index_cast %1 : i32 to index
      %c0_12 = arith.constant 0 : index
      %24 = vector.load %arg16[%23, %c0_12] : memref<128x128xf32, #tpu.memory_space<vmem>>, vector<128x128xf32>
      %c0_13 = arith.constant 0 : index
      %c0_14 = arith.constant 0 : index
      %25 = vector.load %arg7[%c0_13, %c0_14] : memref<1x128xf32, #tpu.memory_space<vmem>>, vector<1x128xf32>
      %26 = vector.broadcast %25 : vector<1x128xf32> to vector<128x128xf32>
      %27 = arith.addf %24, %26 : vector<128x128xf32>
      %cst_15 = arith.constant 0.000000e+00 : f32
      %28 = vector.broadcast %cst_15 : f32 to vector<128x128xf32>
      %29 = arith.maximumf %27, %28 : vector<128x128xf32>
      %30 = arith.truncf %29 : vector<128x128xf32> to vector<128x128xbf16>
      %31 = arith.index_cast %1 : i32 to index
      %c0_16 = arith.constant 0 : index
      %32 = vector.load %arg11[%31, %c0_16] : memref<128x128xf32, #tpu.memory_space<vmem>>, vector<128x128xf32>
      %c0_17 = arith.constant 0 : index
      %c0_18 = arith.constant 0 : index
      %c0_19 = arith.constant 0 : index
      %33 = vector.load %arg8[%c0_17, %c0_18, %c0_19] : memref<1x128x128xbf16, #tpu.memory_space<vmem>>, vector<1x128x128xbf16>
      %34 = vector.shape_cast %33 : vector<1x128x128xbf16> to vector<128x128xbf16>
      %cst_20 = arith.constant dense<0.000000e+00> : vector<128x128xf32>
      %35 = tpu.matmul %30, %34, %cst_20 {dimension_numbers = #tpu.dot_dimension_numbers<[1], [0], [0], [1], [0, 0, 1, 1], [], []>} : vector<128x128xbf16>, vector<128x128xbf16>, vector<128x128xf32> -> vector<128x128xf32>
      %36 = arith.addf %32, %35 : vector<128x128xf32>
      %37 = arith.index_cast %1 : i32 to index
      %c0_21 = arith.constant 0 : index
      %38 = vector.load %arg11[%37, %c0_21] : memref<128x128xf32, #tpu.memory_space<vmem>>, vector<128x128xf32>
      tpu.vector_store %arg11[%37, %c0_21], %36 {strides = array<i32>} : memref<128x128xf32, #tpu.memory_space<vmem>>, vector<128x128xf32>,
    } else {
    }
    return
  }
  func.func @transform_0(%arg0: i32, %arg1: i32) -> (i32, i32) {
    %c0_i32 = arith.constant 0 : i32
    %c0_i32_0 = arith.constant 0 : i32
    return %arg1, %c0_i32 : i32, i32
  }
  func.func @transform_1(%arg0: i32, %arg1: i32) -> (i32, i32) {
    %c0_i32 = arith.constant 0 : i32
    %c0_i32_0 = arith.constant 0 : i32
    %c0_i32_1 = arith.constant 0 : i32
    return %c0_i32, %c0_i32_0 : i32, i32
  }
  func.func @transform_2(%arg0: i32, %arg1: i32) -> (i32, i32, i32) {
    %c0_i32 = arith.constant 0 : i32
    %c0_i32_0 = arith.constant 0 : i32
    %c0_i32_1 = arith.constant 0 : i32
    %c0_i32_2 = arith.constant 0 : i32
    return %c0_i32, %c0_i32_0, %c0_i32_1 : i32, i32, i32
  }
  func.func @transform_3(%arg0: i32, %arg1: i32) -> (i32, i32) {
    %c0_i32 = arith.constant 0 : i32
    %c0_i32_0 = arith.constant 0 : i32
    %c0_i32_1 = arith.constant 0 : i32
    return %c0_i32, %c0_i32_0 : i32, i32
  }
  func.func @transform_4(%arg0: i32, %arg1: i32) -> (i32, i32, i32) {
    %c0_i32 = arith.constant 0 : i32
    %c0_i32_0 = arith.constant 0 : i32
    %c0_i32_1 = arith.constant 0 : i32
    %c0_i32_2 = arith.constant 0 : i32
    return %c0_i32, %c0_i32_0, %c0_i32_1 : i32, i32, i32
  }
  func.func @transform_5(%arg0: i32, %arg1: i32) -> (i32, i32) {
    %c0_i32 = arith.constant 0 : i32
    %c0_i32_0 = arith.constant 0 : i32
    %c0_i32_1 = arith.constant 0 : i32
    return %c0_i32, %c0_i32_0 : i32, i32
  }
  func.func @transform_6(%arg0: i32, %arg1: i32) -> (i32, i32, i32) {
    %c0_i32 = arith.constant 0 : i32
    %c0_i32_0 = arith.constant 0 : i32
    %c0_i32_1 = arith.constant 0 : i32
    %c0_i32_2 = arith.constant 0 : i32
    return %c0_i32, %c0_i32_0, %c0_i32_1 : i32, i32, i32
  }
  func.func @transform_7(%arg0: i32, %arg1: i32) -> (i32, i32, i32) {
    %c0_i32 = arith.constant 0 : i32
    %c0_i32_0 = arith.constant 0 : i32
    %c0_i32_1 = arith.constant 0 : i32
    %c0_i32_2 = arith.constant 0 : i32
    return %c0_i32, %c0_i32_0, %c0_i32_1 : i32, i32, i32
  }
  func.func @transform_8(%arg0: i32, %arg1: i32) -> (i32, i32) {
    %c0_i32 = arith.constant 0 : i32
    %c0_i32_0 = arith.constant 0 : i32
    %c0_i32_1 = arith.constant 0 : i32
    return %c0_i32, %c0_i32_0 : i32, i32
  }
  func.func @transform_9(%arg0: i32, %arg1: i32) -> (i32, i32) {
    %c0_i32 = arith.constant 0 : i32
    %c0_i32_0 = arith.constant 0 : i32
    %c0_i32_1 = arith.constant 0 : i32
    return %c0_i32, %c0_i32_0 : i32, i32
  }
}

</mosaic_0001>

<llo_original>
// kernel: _forward.1
$region0: #{_forward.1}
  #allocation0 [shape = 'u32[]', space=smem, size = 0x4, offset = 0x4, fixed_abs, tag = 'smem constant byte address 0x4 - core index']
  #allocation1 [shape = 'u32[144,128]{1,0:T(1,128)}', space=vmem, size = 0x12000, scoped, tag = 'internal scratch']
  #allocation2 [shape = 'bf16[2,128,128]{2,1,0:T(16,128)(2,1)}', space=vmem, size = 0x10000, scoped, tag = 'scratch operand']
  #allocation3 [shape = 'bf16[128,128]{1,0:T(16,128)(2,1)}', space=vmem, size = 0x8000, scoped, tag = 'scratch operand']
  #allocation4 [shape = 'bf16[128,128]{1,0:T(16,128)(2,1)}', space=vmem, size = 0x8000, scoped, tag = 'scratch operand']
  #allocation5 [shape = 'f32[128,128]{1,0:T(8,128)}', space=vmem, size = 0x10000, scoped, tag = 'scratch operand']
  #allocation6 [shape = 'f32[128,128]{1,0:T(8,128)}', space=vmem, size = 0x10000, scoped, tag = 'scratch operand']
  %s0 = inlined_call_operand.hbm [shape: bf16[128,128], index: 0, kind: input, shape index: {}]
  %s1 = inlined_call_operand.vmem [shape: bf16[128,128], index: 1, kind: input, shape index: {}]
  %s2 = inlined_call_operand.vmem [shape: bf16[2,128,128], index: 2, kind: input, shape index: {}]
  %s3 = inlined_call_operand.vmem [shape: f32[1,128], index: 3, kind: input, shape index: {}]
  %s4 = inlined_call_operand.hbm [shape: bf16[2,128,128], index: 4, kind: input, shape index: {}]
  %s5 = inlined_call_operand.vmem [shape: f32[1,128], index: 5, kind: input, shape index: {}]
  %s6 = inlined_call_operand.hbm [shape: bf16[1,128,128], index: 6, kind: input, shape index: {}]
  %s7 = inlined_call_operand.hbm [shape: bf16[1,128,128], index: 7, kind: input, shape index: {}]
  %s8 = inlined_call_operand.vmem [shape: f32[1,128], index: 8, kind: input, shape index: {}]
  %s9 = inlined_call_operand.vmem [shape: f32[128,128], index: 9, kind: output, shape index: {}]
  %s10 = sld [smem:[#allocation0]]
  $region93: #{_forward.1} parent=0
    _
  %s12 = ssub.s32 1, %s10
  %s13 = scalar_select 0, %s12, %s10
  $region1: #{_forward.1} parent=0
    #allocation7 [shape = 'u8[32768]{0}', space=vmem, size = 0x8000, scoped, tag = 'input window, operand 0, single buffered']
    #allocation8 [shape = 's32[2]{0}', space=sflag, size = 0x8, scoped, tag = 'scoped memory for _forward.1']
    #allocation9 [shape = 'u8[65536]{0}', space=vmem, size = 0x10000, scoped, tag = 'input window, operand 4, single buffered']
    #allocation10 [shape = 's32[1]{0}', space=sflag, size = 0x4, scoped, tag = 'scoped memory for _forward.1']
    #allocation11 [shape = 'u8[32768]{0}', space=vmem, size = 0x8000, scoped, tag = 'input window, operand 6, single buffered']
    #allocation12 [shape = 'u8[32768]{0}', space=vmem, size = 0x8000, scoped, tag = 'input window, operand 7, single buffered']
    #allocation13 [shape = 's32[1]{0}', space=sflag, size = 0x4, scoped, tag = 'scoped memory for _forward.1']
    %14 = vsyncpa [#allocation8], 0
    %15 = vsyncpa [#allocation10], 0
    %16 = vsyncpa [#allocation13], 0
    loop: start=0, step=1, limit=4
    $region2: #{_forward.1} parent=1 // loop_pre_header
      _
    $region3: #{_forward.1} parent=1 // loop_header
      %s18 = sphi 0, %s22
      %p19 = scmp.ge.s32.totalorder %s18, 4
      %s25 = sphi 0, %s37
      %s26 = sphi 0, %s33
      %s27 = sphi 0, %s25
      %s28 = sphi 0, %s26
      %s29 = sphi 0, %s27
      %s30 = sphi 0, %s28
      %s40 = sphi 0, %s42
      %s43 = sphi 0, %s40
      %s44 = sphi 0, %s43
      %s60 = sphi 0, %s44
      %s64 = sphi 0, %s64
      %s66 = sphi 0, %s64
      %s67 = sphi 0, %s66
      %s81 = sphi 0, %s67
      %s85 = sphi 0, %s85
      %s87 = sphi 0, %s85
      %s88 = sphi 0, %s87
      %s102 = sphi 0, %s88
      %s106 = sphi 0, %s106
      %s108 = sphi 0, %s106
      %s109 = sphi 0, %s108
      %s123 = sphi 0, %s109
      %s127 = sphi 0, %s127
      %s129 = sphi 0, %s127
      %s130 = sphi 0, %s129
      %s144 = sphi 0, %s130
      %s148 = sphi 0, %s148
      %s150 = sphi 0, %s148
      %s151 = sphi 0, %s150
      %s165 = sphi 0, %s151
      %s169 = sphi 0, %s169
      %s171 = sphi 0, %s169
      %s172 = sphi 0, %s171
      %s186 = sphi 0, %s172
      %s190 = sphi 0, %s190
      %s192 = sphi 0, %s190
      %s193 = sphi 0, %s192
      %s207 = sphi 0, %s193
      %s211 = sphi 0, %s211
      %s213 = sphi 0, %s211
      %s214 = sphi 0, %s213
      %s228 = sphi 0, %s214
      %s232 = sphi 0, %s232
      %s234 = sphi 0, %s232
      %s235 = sphi 0, %s234
      %s249 = sphi 0, %s235
    $region4: #{_forward.1} parent=1 // loop_header_branch
      %21 = sbr.rel (%p19) target = $region8
    $region5: #{_forward.1} parent=1 // loop_body
      %s23 = ssub.s32 %s18, 1
      %s24 = ssub.s32 %s18, 2
      %s31 = sadd.s32 1, %s26
      %p32 = scmp.ge.s32.totalorder %s31, 1
      %s33 = scalar_select %p32, 0, %s31
      %s34 = sadd.s32 1, %s25
      %s35 = scalar_select %p32, %s34, %s25
      %p36 = scmp.ge.s32.totalorder %s35, 2
      %s37 = scalar_select %p36, 0, %s35
      %s38 = ssub.s32 %s26, %s33
      %p39 = scmp.eq.s32.totalorder %s38, 0
      %s41 = sadd.s32 %s40, 1
      %s42 = scalar_select %p39, %s40, %s41
      %p45 = pneg %p39
      %p46 = scmp.eq.s32.totalorder %s18, 1
      %p47 = por %p45, %p46
      %p48 = scmp.ne.s32.totalorder %s40, %s43
      %p49 = scmp.eq.s32.totalorder %s18, 0
      %p50 = por %p48, %p49
      %p51 = scmp.ne.s32.totalorder %s40, %s43
      %p52 = scmp.eq.s32.totalorder %s23, 1
      %p53 = por %p51, %p52
      %p54 = scmp.ne.s32.totalorder %s43, %s44
      %p55 = scmp.eq.s32.totalorder %s23, 0
      %p56 = por %p54, %p55
      %p57 = scmp.ne.s32.totalorder %s43, %s44
      %p58 = scmp.eq.s32.totalorder %s24, 1
      %p59 = por %p57, %p58
      %p61 = scmp.ne.s32.totalorder %s44, %s60
      %p62 = scmp.eq.s32.totalorder %s24, 0
      %p63 = por %p61, %p62
      %s65 = sadd.s32 %s64, 1
      %p68 = scmp.eq.s32.totalorder %s18, 1
      %p69 = scmp.ne.s32.totalorder %s64, %s66
      %p70 = scmp.eq.s32.totalorder %s18, 0
      %p71 = por %p69, %p70
      %p72 = scmp.ne.s32.totalorder %s64, %s66
      %p73 = scmp.eq.s32.totalorder %s23, 1
      %p74 = por %p72, %p73
      %p75 = scmp.ne.s32.totalorder %s66, %s67
      %p76 = scmp.eq.s32.totalorder %s23, 0
      %p77 = por %p75, %p76
      %p78 = scmp.ne.s32.totalorder %s66, %s67
      %p79 = scmp.eq.s32.totalorder %s24, 1
      %p80 = por %p78, %p79
      %p82 = scmp.ne.s32.totalorder %s67, %s81
      %p83 = scmp.eq.s32.totalorder %s24, 0
      %p84 = por %p82, %p83
      %s86 = sadd.s32 %s85, 1
      %p89 = scmp.eq.s32.totalorder %s18, 1
      %p90 = scmp.ne.s32.totalorder %s85, %s87
      %p91 = scmp.eq.s32.totalorder %s18, 0
      %p92 = por %p90, %p91
      %p93 = scmp.ne.s32.totalorder %s85, %s87
      %p94 = scmp.eq.s32.totalorder %s23, 1
      %p95 = por %p93, %p94
      %p96 = scmp.ne.s32.totalorder %s87, %s88
      %p97 = scmp.eq.s32.totalorder %s23, 0
      %p98 = por %p96, %p97
      %p99 = scmp.ne.s32.totalorder %s87, %s88
      %p100 = scmp.eq.s32.totalorder %s24, 1
      %p101 = por %p99, %p100
      %p103 = scmp.ne.s32.totalorder %s88, %s102
      %p104 = scmp.eq.s32.totalorder %s24, 0
      %p105 = por %p103, %p104
      %s107 = sadd.s32 %s106, 1
      %p110 = scmp.eq.s32.totalorder %s18, 1
      %p111 = scmp.ne.s32.totalorder %s106, %s108
      %p112 = scmp.eq.s32.totalorder %s18, 0
      %p113 = por %p111, %p112
      %p114 = scmp.ne.s32.totalorder %s106, %s108
      %p115 = scmp.eq.s32.totalorder %s23, 1
      %p116 = por %p114, %p115
      %p117 = scmp.ne.s32.totalorder %s108, %s109
      %p118 = scmp.eq.s32.totalorder %s23, 0
      %p119 = por %p117, %p118
      %p120 = scmp.ne.s32.totalorder %s108, %s109
      %p121 = scmp.eq.s32.totalorder %s24, 1
      %p122 = por %p120, %p121
      %p124 = scmp.ne.s32.totalorder %s109, %s123
      %p125 = scmp.eq.s32.totalorder %s24, 0
      %p126 = por %p124, %p125
      %s128 = sadd.s32 %s127, 1
      %p131 = scmp.eq.s32.totalorder %s18, 1
      %p132 = scmp.ne.s32.totalorder %s127, %s129
      %p133 = scmp.eq.s32.totalorder %s18, 0
      %p134 = por %p132, %p133
      %p135 = scmp.ne.s32.totalorder %s127, %s129
      %p136 = scmp.eq.s32.totalorder %s23, 1
      %p137 = por %p135, %p136
      %p138 = scmp.ne.s32.totalorder %s129, %s130
      %p139 = scmp.eq.s32.totalorder %s23, 0
      %p140 = por %p138, %p139
      %p141 = scmp.ne.s32.totalorder %s129, %s130
      %p142 = scmp.eq.s32.totalorder %s24, 1
      %p143 = por %p141, %p142
      %p145 = scmp.ne.s32.totalorder %s130, %s144
      %p146 = scmp.eq.s32.totalorder %s24, 0
      %p147 = por %p145, %p146
      %s149 = sadd.s32 %s148, 1
      %p152 = scmp.eq.s32.totalorder %s18, 1
      %p153 = scmp.ne.s32.totalorder %s148, %s150
      %p154 = scmp.eq.s32.totalorder %s18, 0
      %p155 = por %p153, %p154
      %p156 = scmp.ne.s32.totalorder %s148, %s150
      %p157 = scmp.eq.s32.totalorder %s23, 1
      %p158 = por %p156, %p157
      %p159 = scmp.ne.s32.totalorder %s150, %s151
      %p160 = scmp.eq.s32.totalorder %s23, 0
      %p161 = por %p159, %p160
      %p162 = scmp.ne.s32.totalorder %s150, %s151
      %p163 = scmp.eq.s32.totalorder %s24, 1
      %p164 = por %p162, %p163
      %p166 = scmp.ne.s32.totalorder %s151, %s165
      %p167 = scmp.eq.s32.totalorder %s24, 0
      %p168 = por %p166, %p167
      %s170 = sadd.s32 %s169, 1
      %p173 = scmp.eq.s32.totalorder %s18, 1
      %p174 = scmp.ne.s32.totalorder %s169, %s171
      %p175 = scmp.eq.s32.totalorder %s18, 0
      %p176 = por %p174, %p175
      %p177 = scmp.ne.s32.totalorder %s169, %s171
      %p178 = scmp.eq.s32.totalorder %s23, 1
      %p179 = por %p177, %p178
      %p180 = scmp.ne.s32.totalorder %s171, %s172
      %p181 = scmp.eq.s32.totalorder %s23, 0
      %p182 = por %p180, %p181
      %p183 = scmp.ne.s32.totalorder %s171, %s172
      %p184 = scmp.eq.s32.totalorder %s24, 1
      %p185 = por %p183, %p184
      %p187 = scmp.ne.s32.totalorder %s172, %s186
      %p188 = scmp.eq.s32.totalorder %s24, 0
      %p189 = por %p187, %p188
      %s191 = sadd.s32 %s190, 1
      %p194 = scmp.eq.s32.totalorder %s18, 1
      %p195 = scmp.ne.s32.totalorder %s190, %s192
      %p196 = scmp.eq.s32.totalorder %s18, 0
      %p197 = por %p195, %p196
      %p198 = scmp.ne.s32.totalorder %s190, %s192
      %p199 = scmp.eq.s32.totalorder %s23, 1
      %p200 = por %p198, %p199
      %p201 = scmp.ne.s32.totalorder %s192, %s193
      %p202 = scmp.eq.s32.totalorder %s23, 0
      %p203 = por %p201, %p202
      %p204 = scmp.ne.s32.totalorder %s192, %s193
      %p205 = scmp.eq.s32.totalorder %s24, 1
      %p206 = por %p204, %p205
      %p208 = scmp.ne.s32.totalorder %s193, %s207
      %p209 = scmp.eq.s32.totalorder %s24, 0
      %p210 = por %p208, %p209
      %s212 = sadd.s32 %s211, 1
      %p215 = scmp.eq.s32.totalorder %s18, 1
      %p216 = scmp.ne.s32.totalorder %s211, %s213
      %p217 = scmp.eq.s32.totalorder %s18, 0
      %p218 = por %p216, %p217
      %p219 = scmp.ne.s32.totalorder %s211, %s213
      %p220 = scmp.eq.s32.totalorder %s23, 1
      %p221 = por %p219, %p220
      %p222 = scmp.ne.s32.totalorder %s213, %s214
      %p223 = scmp.eq.s32.totalorder %s23, 0
      %p224 = por %p222, %p223
      %p225 = scmp.ne.s32.totalorder %s213, %s214
      %p226 = scmp.eq.s32.totalorder %s24, 1
      %p227 = por %p225, %p226
      %p229 = scmp.ne.s32.totalorder %s214, %s228
      %p230 = scmp.eq.s32.totalorder %s24, 0
      %p231 = por %p229, %p230
      %s233 = sadd.s32 %s232, 1
      %p236 = scmp.eq.s32.totalorder %s18, 1
      %p237 = scmp.ne.s32.totalorder %s232, %s234
      %p238 = scmp.eq.s32.totalorder %s18, 0
      %p239 = por %p237, %p238
      %p240 = scmp.ne.s32.totalorder %s232, %s234
      %p241 = scmp.eq.s32.totalorder %s23, 1
      %p242 = por %p240, %p241
      %p243 = scmp.ne.s32.totalorder %s234, %s235
      %p244 = scmp.eq.s32.totalorder %s23, 0
      %p245 = por %p243, %p244
      %p246 = scmp.ne.s32.totalorder %s234, %s235
      %p247 = scmp.eq.s32.totalorder %s24, 1
      %p248 = por %p246, %p247
      %p250 = scmp.ne.s32.totalorder %s235, %s249
      %p251 = scmp.eq.s32.totalorder %s24, 0
      %p252 = por %p250, %p251
      %p253 = scmp.le.s32.totalorder 1, %s18
      %p254 = scmp.lt.s32.totalorder %s18, 3
      %p255 = pnand %p253, %p254
      %p256 = pneg %p255
      // Predicated region
      $region9: #{_forward.1} parent=5 // pred_check
        _
      $region10: #{_forward.1} parent=5 // pred_check_branch
        %258 = sbr.rel (%p255) target = $region12
      $region11: #{_forward.1} parent=5 // pred_region
        %s259 = ssub.s32 %s18, 1
        // Predicated region
        $region13: #{_forward.1} parent=11 // pred_check
          %p260 = pneg %p56
        $region14: #{_forward.1} parent=11 // pred_check_branch
          %262 = sbr.rel (%p260) target = $region16
        $region15: #{_forward.1} parent=11 // pred_region
          %s263 = smul.u32 16, %s28
          %s265 = ssub.s32 1024, 1024
          %266 = vsyncadd [#allocation8], %s265
          %s267 = smul.addr %s263, 64
          %s268 = scalar_lea.hbm %s0, %s267
          %s269 = sshll.u32 [#allocation7], 4
          %s270 = int_to_ptr.vmem [resolvable:$true] %s269
          %275 = dma.hbm_to_vmem [thread:$0]  %s268, 1024, %s270, [#allocation8], 64, 64, 4
        $region16: #{_forward.1} parent=11 // pred_fallthru
          _
        // Predicated region
        $region17: #{_forward.1} parent=11 // pred_check
          %p276 = pneg %p77
        $region18: #{_forward.1} parent=11 // pred_check_branch
          %278 = sbr.rel (%p276) target = $region20
        $region19: #{_forward.1} parent=11 // pred_region
          _
        $region20: #{_forward.1} parent=11 // pred_fallthru
          _
        // Predicated region
        $region21: #{_forward.1} parent=11 // pred_check
          %p279 = pneg %p98
        $region22: #{_forward.1} parent=11 // pred_check_branch
          %281 = sbr.rel (%p279) target = $region24
        $region23: #{_forward.1} parent=11 // pred_region
          _
        $region24: #{_forward.1} parent=11 // pred_fallthru
          _
        // Predicated region
        $region25: #{_forward.1} parent=11 // pred_check
          %p282 = pneg %p119
        $region26: #{_forward.1} parent=11 // pred_check_branch
          %284 = sbr.rel (%p282) target = $region28
        $region27: #{_forward.1} parent=11 // pred_region
          _
        $region28: #{_forward.1} parent=11 // pred_fallthru
          _
        // Predicated region
        $region29: #{_forward.1} parent=11 // pred_check
          %p285 = pneg %p140
        $region30: #{_forward.1} parent=11 // pred_check_branch
          %287 = sbr.rel (%p285) target = $region32
        $region31: #{_forward.1} parent=11 // pred_region
          %s289 = ssub.s32 2048, 2048
          %290 = vsyncadd [#allocation10], %s289
          %s291 = sshll.u32 [#allocation9], 4
          %s292 = int_to_ptr.vmem [resolvable:$true] %s291
          %297 = dma.hbm_to_vmem [thread:$0]  %s4, 2048, %s292, [#allocation10], 64, 64, 4
        $region32: #{_forward.1} parent=11 // pred_fallthru
          _
        // Predicated region
        $region33: #{_forward.1} parent=11 // pred_check
          %p298 = pneg %p161
        $region34: #{_forward.1} parent=11 // pred_check_branch
          %300 = sbr.rel (%p298) target = $region36
        $region35: #{_forward.1} parent=11 // pred_region
          _
        $region36: #{_forward.1} parent=11 // pred_fallthru
          _
        // Predicated region
        $region37: #{_forward.1} parent=11 // pred_check
          %p301 = pneg %p182
        $region38: #{_forward.1} parent=11 // pred_check_branch
          %303 = sbr.rel (%p301) target = $region40
        $region39: #{_forward.1} parent=11 // pred_region
          %s305 = ssub.s32 1024, 1024
          %306 = vsyncadd [#allocation10], %s305
          %s307 = sshll.u32 [#allocation11], 4
          %s308 = int_to_ptr.vmem [resolvable:$true] %s307
          %313 = dma.hbm_to_vmem [thread:$0]  %s6, 1024, %s308, [#allocation10], 64, 64, 4
        $region40: #{_forward.1} parent=11 // pred_fallthru
          _
        // Predicated region
        $region41: #{_forward.1} parent=11 // pred_check
          %p314 = pneg %p203
        $region42: #{_forward.1} parent=11 // pred_check_branch
          %316 = sbr.rel (%p314) target = $region44
        $region43: #{_forward.1} parent=11 // pred_region
          %s318 = ssub.s32 1024, 1024
          %319 = vsyncadd [#allocation13], %s318
          %s320 = sshll.u32 [#allocation12], 4
          %s321 = int_to_ptr.vmem [resolvable:$true] %s320
          %326 = dma.hbm_to_vmem [thread:$0]  %s7, 1024, %s321, [#allocation13], 64, 64, 4
        $region44: #{_forward.1} parent=11 // pred_fallthru
          _
        // Predicated region
        $region45: #{_forward.1} parent=11 // pred_check
          %p327 = pneg %p224
        $region46: #{_forward.1} parent=11 // pred_check_branch
          %329 = sbr.rel (%p327) target = $region48
        $region47: #{_forward.1} parent=11 // pred_region
          _
        $region48: #{_forward.1} parent=11 // pred_fallthru
          _
      $region12: #{_forward.1} parent=5 // pred_fallthru
        _
      %p330 = scmp.lt.s32.totalorder %s18, 2
      // Predicated region
      $region49: #{_forward.1} parent=5 // pred_check
        %p331 = pneg %p330
      $region50: #{_forward.1} parent=5 // pred_check_branch
        %333 = sbr.rel (%p331) target = $region52
      $region51: #{_forward.1} parent=5 // pred_region
        _
      $region52: #{_forward.1} parent=5 // pred_fallthru
        _
      %p334 = scmp.le.s32.totalorder 1, %s18
      %p335 = scmp.lt.s32.totalorder %s18, 3
      %p336 = pnand %p334, %p335
      %p337 = pneg %p336
      // Predicated region
      $region53: #{_forward.1} parent=5 // pred_check
        _
      $region54: #{_forward.1} parent=5 // pred_check_branch
        %339 = sbr.rel (%p336) target = $region56
      $region55: #{_forward.1} parent=5 // pred_region
        %s340 = ssub.s32 %s18, 1
        // Predicated region
        $region57: #{_forward.1} parent=55 // pred_check
          %p341 = pneg %p56
        $region58: #{_forward.1} parent=55 // pred_check_branch
          %343 = sbr.rel (%p341) target = $region60
        $region59: #{_forward.1} parent=55 // pred_region
          %344 = dma.done [#allocation8], 1024
        $region60: #{_forward.1} parent=55 // pred_fallthru
          _
        // Predicated region
        $region61: #{_forward.1} parent=55 // pred_check
          %p345 = pneg %p140
        $region62: #{_forward.1} parent=55 // pred_check_branch
          %347 = sbr.rel (%p345) target = $region64
        $region63: #{_forward.1} parent=55 // pred_region
          %348 = dma.done [#allocation10], 2048
        $region64: #{_forward.1} parent=55 // pred_fallthru
          _
        // Predicated region
        $region65: #{_forward.1} parent=55 // pred_check
          %p349 = pneg %p182
        $region66: #{_forward.1} parent=55 // pred_check_branch
          %351 = sbr.rel (%p349) target = $region68
        $region67: #{_forward.1} parent=55 // pred_region
          %352 = dma.done [#allocation10], 1024
        $region68: #{_forward.1} parent=55 // pred_fallthru
          _
        // Predicated region
        $region69: #{_forward.1} parent=55 // pred_check
          %p353 = pneg %p203
        $region70: #{_forward.1} parent=55 // pred_check_branch
          %355 = sbr.rel (%p353) target = $region72
        $region71: #{_forward.1} parent=55 // pred_region
          %356 = dma.done [#allocation13], 1024
        $region72: #{_forward.1} parent=55 // pred_fallthru
          _
        %p357 = pneg %p56
        %p358 = pneg %p53
        %p359 = pneg %p77
        %p360 = pneg %p74
        %p361 = pneg %p98
        %p362 = pneg %p95
        %p363 = pneg %p119
        %p364 = pneg %p116
        %p365 = pneg %p140
        %p366 = pneg %p137
        %p367 = pneg %p161
        %p368 = pneg %p158
        %p369 = pneg %p182
        %p370 = pneg %p179
        %p371 = pneg %p203
        %p372 = pneg %p200
        %p373 = pneg %p224
        %p374 = pneg %p221
        %p375 = pneg %p245
        %p376 = pneg %p242
        %s377 = smul.u32 16, %s28
        %s379 = smul.u32 %s28, 128
        %p380 = scmp.eq.s32.totalorder %s27, 0
        // Predicated region
        $region73: #{_forward.1} parent=55 // pred_check
          %p381 = pneg %p380
        $region74: #{_forward.1} parent=55 // pred_check_branch
          %383 = sbr.rel (%p381) target = $region76
        $region75: #{_forward.1} parent=55 // pred_region
          %s384 = sshra.s32 %s379, 3
          %s385 = sand.u32 %s379, 7
          %s386 = smul.addr %s384, 4
          %s387 = scalar_lea.vmem %s1, %s386
          %v388 = vld [vmem:[%s387] sm:$0xf]
          %v389 = vld [vmem:[%s387 + $0x4] sm:$0xf]
          %v390 = vld [vmem:[%s387 + $0x8] sm:$0xf]
          %v391 = vld [vmem:[%s387 + $0xc] sm:$0xf]
          %v392 = vld [vmem:[%s387 + $0x10] sm:$0xf]
          %v393 = vld [vmem:[%s387 + $0x14] sm:$0xf]
          %v394 = vld [vmem:[%s387 + $0x18] sm:$0xf]
          %v395 = vld [vmem:[%s387 + $0x1c] sm:$0xf]
          %v396 = vld [vmem:[%s387 + $0x20] sm:$0xf]
          %v397 = vld [vmem:[%s387 + $0x24] sm:$0xf]
          %v398 = vld [vmem:[%s387 + $0x28] sm:$0xf]
          %v399 = vld [vmem:[%s387 + $0x2c] sm:$0xf]
          %v400 = vld [vmem:[%s387 + $0x30] sm:$0xf]
          %v401 = vld [vmem:[%s387 + $0x34] sm:$0xf]
          %v402 = vld [vmem:[%s387 + $0x38] sm:$0xf]
          %v403 = vld [vmem:[%s387 + $0x3c] sm:$0xf]
          %v404 = vld [vmem:[%s2] sm:$0xf]
          %v405 = vld [vmem:[%s2 + $0x4] sm:$0xf]
          %v406 = vld [vmem:[%s2 + $0x8] sm:$0xf]
          %v407 = vld [vmem:[%s2 + $0xc] sm:$0xf]
          %v408 = vld [vmem:[%s2 + $0x10] sm:$0xf]
          %v409 = vld [vmem:[%s2 + $0x14] sm:$0xf]
          %v410 = vld [vmem:[%s2 + $0x18] sm:$0xf]
          %v411 = vld [vmem:[%s2 + $0x1c] sm:$0xf]
          %v412 = vld [vmem:[%s2 + $0x20] sm:$0xf]
          %v413 = vld [vmem:[%s2 + $0x24] sm:$0xf]
          %v414 = vld [vmem:[%s2 + $0x28] sm:$0xf]
          %v415 = vld [vmem:[%s2 + $0x2c] sm:$0xf]
          %v416 = vld [vmem:[%s2 + $0x30] sm:$0xf]
          %v417 = vld [vmem:[%s2 + $0x34] sm:$0xf]
          %v418 = vld [vmem:[%s2 + $0x38] sm:$0xf]
          %v419 = vld [vmem:[%s2 + $0x3c] sm:$0xf]
          %v436 = vunpack.c.l.b16 %v388
          %v437 = vunpack.c.l.b16 %v389
          %v438 = vunpack.c.l.b16 %v390
          %v439 = vunpack.c.l.b16 %v391
          %v440 = vunpack.c.l.b16 %v392
          %v441 = vunpack.c.l.b16 %v393
          %v442 = vunpack.c.l.b16 %v394
          %v443 = vunpack.c.l.b16 %v395
          %v444 = vunpack.c.l.b16 %v396
          %v445 = vunpack.c.l.b16 %v397
          %v446 = vunpack.c.l.b16 %v398
          %v447 = vunpack.c.l.b16 %v399
          %v448 = vunpack.c.l.b16 %v400
          %v449 = vunpack.c.l.b16 %v401
          %v450 = vunpack.c.l.b16 %v402
          %v451 = vunpack.c.l.b16 %v403
          %v452 = vpack.c.b16 %v437, %v436
          %v453 = vpack.c.b16 %v439, %v438
          %v454 = vpack.c.b16 %v441, %v440
          %v455 = vpack.c.b16 %v443, %v442
          %v456 = vpack.c.b16 %v445, %v444
          %v457 = vpack.c.b16 %v447, %v446
          %v458 = vpack.c.b16 %v449, %v448
          %v459 = vpack.c.b16 %v451, %v450
          %v484 = vunpack.c.l.b16 %v404
          %v485 = vunpack.c.l.b16 %v405
          %v486 = vunpack.c.l.b16 %v406
          %v487 = vunpack.c.l.b16 %v407
          %v488 = vunpack.c.l.b16 %v408
          %v489 = vunpack.c.l.b16 %v409
          %v490 = vunpack.c.l.b16 %v410
          %v491 = vunpack.c.l.b16 %v411
          %v492 = vunpack.c.l.b16 %v412
          %v493 = vunpack.c.l.b16 %v413
          %v494 = vunpack.c.l.b16 %v414
          %v495 = vunpack.c.l.b16 %v415
          %v496 = vunpack.c.l.b16 %v416
          %v497 = vunpack.c.l.b16 %v417
          %v498 = vunpack.c.l.b16 %v418
          %v499 = vunpack.c.l.b16 %v419
          %v500 = vpack.c.b16 %v485, %v484
          %v501 = vpack.c.b16 %v487, %v486
          %v502 = vpack.c.b16 %v489, %v488
          %v503 = vpack.c.b16 %v491, %v490
          %v504 = vpack.c.b16 %v493, %v492
          %v505 = vpack.c.b16 %v495, %v494
          %v506 = vpack.c.b16 %v497, %v496
          %v507 = vpack.c.b16 %v499, %v498
          %516 = vmatprep.subr.bf16.mxu0 0
          %517 = vmatpush1.bf16.msra.mxu0 %v500
          %518 = vmatprep.subr.bf16.mxu0 0
          %519 = vmatpush1.bf16.msra.mxu0 %v501
          %520 = vmatprep.subr.bf16.mxu0 0
          %521 = vmatpush1.bf16.msra.mxu0 %v502
          %522 = vmatprep.subr.bf16.mxu0 0
          %523 = vmatpush1.bf16.msra.mxu0 %v503
          %524 = vmatprep.subr.bf16.mxu0 0
          %525 = vmatpush1.bf16.msra.mxu0 %v504
          %526 = vmatprep.subr.bf16.mxu0 0
          %527 = vmatpush1.bf16.msra.mxu0 %v505
          %528 = vmatprep.subr.bf16.mxu0 0
          %529 = vmatpush1.bf16.msra.mxu0 %v506
          %530 = vmatprep.subr.bf16.mxu0 0
          %531 = vmatpush1.bf16.msra.mxu0 %v507
          %532 = vmatprep.subr.bf16.mxu0 0
          %533 = vmatpush1.bf16.msra.mxu0 0
          %534 = vmatprep.subr.bf16.mxu0 0
          %535 = vmatpush1.bf16.msra.mxu0 0
          %536 = vmatprep.subr.bf16.mxu0 0
          %537 = vmatpush1.bf16.msra.mxu0 0
          %538 = vmatprep.subr.bf16.mxu0 0
          %539 = vmatpush1.bf16.msra.mxu0 0
          %540 = vmatprep.subr.bf16.mxu0 0
          %541 = vmatpush1.bf16.msra.mxu0 0
          %542 = vmatprep.subr.bf16.mxu0 0
          %543 = vmatpush1.bf16.msra.mxu0 0
          %544 = vmatprep.subr.bf16.mxu0 0
          %545 = vmatpush1.bf16.msra.mxu0 0
          %546 = vmatprep.subr.bf16.mxu0 0
          %547 = vmatpush1.bf16.msra.mxu0 0
          %548 = vmatprep.mubr.bf16.mxu0 0
          %549 = vmatmul.mubr.bf16.gmra.mrb[0].mxu0 %v452
          %v550 = vpop.f32.mrb[0].mxu0
          %v551 = vadd.f32 0.0, %v550
          %v552 = vpop.f32.mrb[0].mxu0
          %v553 = vpop.f32.mrb[0].mxu0
          %v554 = vadd.f32 0.0, %v553
          %v555 = vpop.f32.mrb[0].mxu0
          %556 = vmatprep.mubr.bf16.mxu0 0
          %557 = vmatmul.mubr.bf16.gmra.mrb[0].mxu0 %v453
          %v558 = vpop.f32.mrb[0].mxu0
          %v559 = vadd.f32 0.0, %v558
          %v560 = vpop.f32.mrb[0].mxu0
          %v561 = vpop.f32.mrb[0].mxu0
          %v562 = vadd.f32 0.0, %v561
          %v563 = vpop.f32.mrb[0].mxu0
          %564 = vmatprep.mubr.bf16.mxu0 0
          %565 = vmatmul.mubr.bf16.gmra.mrb[0].mxu0 %v454
          %v566 = vpop.f32.mrb[0].mxu0
          %v567 = vadd.f32 0.0, %v566
          %v568 = vpop.f32.mrb[0].mxu0
          %v569 = vpop.f32.mrb[0].mxu0
          %v570 = vadd.f32 0.0, %v569
          %v571 = vpop.f32.mrb[0].mxu0
          %572 = vmatprep.mubr.bf16.mxu0 0
          %573 = vmatmul.mubr.bf16.gmra.mrb[0].mxu0 %v455
          %v574 = vpop.f32.mrb[0].mxu0
          %v575 = vadd.f32 0.0, %v574
          %v576 = vpop.f32.mrb[0].mxu0
          %v577 = vpop.f32.mrb[0].mxu0
          %v578 = vadd.f32 0.0, %v577
          %v579 = vpop.f32.mrb[0].mxu0
          %580 = vmatprep.mubr.bf16.mxu0 0
          %581 = vmatmul.mubr.bf16.gmra.mrb[0].mxu0 %v456
          %v582 = vpop.f32.mrb[0].mxu0
          %v583 = vadd.f32 0.0, %v582
          %v584 = vpop.f32.mrb[0].mxu0
          %v585 = vpop.f32.mrb[0].mxu0
          %v586 = vadd.f32 0.0, %v585
          %v587 = vpop.f32.mrb[0].mxu0
          %588 = vmatprep.mubr.bf16.mxu0 0
          %589 = vmatmul.mubr.bf16.gmra.mrb[0].mxu0 %v457
          %v590 = vpop.f32.mrb[0].mxu0
          %v591 = vadd.f32 0.0, %v590
          %v592 = vpop.f32.mrb[0].mxu0
          %v593 = vpop.f32.mrb[0].mxu0
          %v594 = vadd.f32 0.0, %v593
          %v595 = vpop.f32.mrb[0].mxu0
          %596 = vmatprep.mubr.bf16.mxu0 0
          %597 = vmatmul.mubr.bf16.gmra.mrb[0].mxu0 %v458
          %v598 = vpop.f32.mrb[0].mxu0
          %v599 = vadd.f32 0.0, %v598
          %v600 = vpop.f32.mrb[0].mxu0
          %v601 = vpop.f32.mrb[0].mxu0
          %v602 = vadd.f32 0.0, %v601
          %v603 = vpop.f32.mrb[0].mxu0
          %604 = vmatprep.mubr.bf16.mxu0 0
          %605 = vmatmul.mubr.bf16.gmra.mrb[0].mxu0 %v459
          %v606 = vpop.f32.mrb[0].mxu0
          %v607 = vadd.f32 0.0, %v606
          %v608 = vpop.f32.mrb[0].mxu0
          %v609 = vpop.f32.mrb[0].mxu0
          %v610 = vadd.f32 0.0, %v609
          %v611 = vpop.f32.mrb[0].mxu0
          %612 = vdwg.mxu0
          %s613 = scalar_lea.vmem [#allocation5], %s379
          %614 = vst [vmem:[%s613] sm:$0xff] %v551
          %615 = vst [vmem:[%s613 + $0x8] sm:$0xff] %v554
          %616 = vst [vmem:[%s613 + $0x10] sm:$0xff] %v559
          %617 = vst [vmem:[%s613 + $0x18] sm:$0xff] %v562
          %618 = vst [vmem:[%s613 + $0x20] sm:$0xff] %v567
          %619 = vst [vmem:[%s613 + $0x28] sm:$0xff] %v570
          %620 = vst [vmem:[%s613 + $0x30] sm:$0xff] %v575
          %621 = vst [vmem:[%s613 + $0x38] sm:$0xff] %v578
          %622 = vst [vmem:[%s613 + $0x40] sm:$0xff] %v583
          %623 = vst [vmem:[%s613 + $0x48] sm:$0xff] %v586
          %624 = vst [vmem:[%s613 + $0x50] sm:$0xff] %v591
          %625 = vst [vmem:[%s613 + $0x58] sm:$0xff] %v594
          %626 = vst [vmem:[%s613 + $0x60] sm:$0xff] %v599
          %627 = vst [vmem:[%s613 + $0x68] sm:$0xff] %v602
          %628 = vst [vmem:[%s613 + $0x70] sm:$0xff] %v607
          %629 = vst [vmem:[%s613 + $0x78] sm:$0xff] %v610
          %v630 = vld [vmem:[#allocation12] sm:$0xf]
          %v631 = vld [vmem:[#allocation12 + $0x4] sm:$0xf]
          %v632 = vld [vmem:[#allocation12 + $0x8] sm:$0xf]
          %v633 = vld [vmem:[#allocation12 + $0xc] sm:$0xf]
          %v634 = vld [vmem:[#allocation12 + $0x10] sm:$0xf]
          %v635 = vld [vmem:[#allocation12 + $0x14] sm:$0xf]
          %v636 = vld [vmem:[#allocation12 + $0x18] sm:$0xf]
          %v637 = vld [vmem:[#allocation12 + $0x1c] sm:$0xf]
          %v638 = vld [vmem:[#allocation12 + $0x20] sm:$0xf]
          %v639 = vld [vmem:[#allocation12 + $0x24] sm:$0xf]
          %v640 = vld [vmem:[#allocation12 + $0x28] sm:$0xf]
          %v641 = vld [vmem:[#allocation12 + $0x2c] sm:$0xf]
          %v642 = vld [vmem:[#allocation12 + $0x30] sm:$0xf]
          %v643 = vld [vmem:[#allocation12 + $0x34] sm:$0xf]
          %v644 = vld [vmem:[#allocation12 + $0x38] sm:$0xf]
          %v645 = vld [vmem:[#allocation12 + $0x3c] sm:$0xf]
          %v646 = vld [vmem:[%s8] sm:$0x1]
          %v648 = vlaneseq
          %v649 = vshrl.u32 %v648, 7
          %v650 = vsub.s32 0, %v649
          %v651 = vrot.slane %v646, %v650
          %v669 = vunpack.c.l.b16 %v630
          %v670 = vunpack.c.l.b16 %v631
          %v671 = vunpack.c.l.b16 %v632
          %v672 = vunpack.c.l.b16 %v633
          %v673 = vunpack.c.l.b16 %v634
          %v674 = vunpack.c.l.b16 %v635
          %v675 = vunpack.c.l.b16 %v636
          %v676 = vunpack.c.l.b16 %v637
          %v677 = vunpack.c.l.b16 %v638
          %v678 = vunpack.c.l.b16 %v639
          %v679 = vunpack.c.l.b16 %v640
          %v680 = vunpack.c.l.b16 %v641
          %v681 = vunpack.c.l.b16 %v642
          %v682 = vunpack.c.l.b16 %v643
          %v683 = vunpack.c.l.b16 %v644
          %v684 = vunpack.c.l.b16 %v645
          %v685 = vpack.c.b16 %v670, %v669
          %v686 = vpack.c.b16 %v672, %v671
          %v687 = vpack.c.b16 %v674, %v673
          %v688 = vpack.c.b16 %v676, %v675
          %v689 = vpack.c.b16 %v678, %v677
          %v690 = vpack.c.b16 %v680, %v679
          %v691 = vpack.c.b16 %v682, %v681
          %v692 = vpack.c.b16 %v684, %v683
          %701 = vmatprep.subr.bf16.mxu0 0
          %702 = vmatpush1.bf16.msra.mxu0 %v685
          %703 = vmatprep.subr.bf16.mxu0 0
          %704 = vmatpush1.bf16.msra.mxu0 %v686
          %705 = vmatprep.subr.bf16.mxu0 0
          %706 = vmatpush1.bf16.msra.mxu0 %v687
          %707 = vmatprep.subr.bf16.mxu0 0
          %708 = vmatpush1.bf16.msra.mxu0 %v688
          %709 = vmatprep.subr.bf16.mxu0 0
          %710 = vmatpush1.bf16.msra.mxu0 %v689
          %711 = vmatprep.subr.bf16.mxu0 0
          %712 = vmatpush1.bf16.msra.mxu0 %v690
          %713 = vmatprep.subr.bf16.mxu0 0
          %714 = vmatpush1.bf16.msra.mxu0 %v691
          %715 = vmatprep.subr.bf16.mxu0 0
          %716 = vmatpush1.bf16.msra.mxu0 %v692
          %717 = vmatprep.subr.bf16.mxu0 0
          %718 = vmatpush1.bf16.msra.mxu0 0
          %719 = vmatprep.subr.bf16.mxu0 0
          %720 = vmatpush1.bf16.msra.mxu0 0
          %721 = vmatprep.subr.bf16.mxu0 0
          %722 = vmatpush1.bf16.msra.mxu0 0
          %723 = vmatprep.subr.bf16.mxu0 0
          %724 = vmatpush1.bf16.msra.mxu0 0
          %725 = vmatprep.subr.bf16.mxu0 0
          %726 = vmatpush1.bf16.msra.mxu0 0
          %727 = vmatprep.subr.bf16.mxu0 0
          %728 = vmatpush1.bf16.msra.mxu0 0
          %729 = vmatprep.subr.bf16.mxu0 0
          %730 = vmatpush1.bf16.msra.mxu0 0
          %731 = vmatprep.subr.bf16.mxu0 0
          %732 = vmatpush1.bf16.msra.mxu0 0
          %733 = vmatprep.mubr.bf16.mxu0 0
          %734 = vmatmul.mubr.bf16.gmra.mrb[0].mxu0 %v452
          %v735 = vpop.f32.mrb[0].mxu0
          %v736 = vadd.f32 %v651, %v735
          %v737 = vpop.f32.mrb[0].mxu0
          %v738 = vpop.f32.mrb[0].mxu0
          %v739 = vadd.f32 %v651, %v738
          %v740 = vpop.f32.mrb[0].mxu0
          %741 = vmatprep.mubr.bf16.mxu0 0
          %742 = vmatmul.mubr.bf16.gmra.mrb[0].mxu0 %v453
          %v743 = vpop.f32.mrb[0].mxu0
          %v744 = vadd.f32 %v651, %v743
          %v745 = vpop.f32.mrb[0].mxu0
          %v746 = vpop.f32.mrb[0].mxu0
          %v747 = vadd.f32 %v651, %v746
          %v748 = vpop.f32.mrb[0].mxu0
          %749 = vmatprep.mubr.bf16.mxu0 0
          %750 = vmatmul.mubr.bf16.gmra.mrb[0].mxu0 %v454
          %v751 = vpop.f32.mrb[0].mxu0
          %v752 = vadd.f32 %v651, %v751
          %v753 = vpop.f32.mrb[0].mxu0
          %v754 = vpop.f32.mrb[0].mxu0
          %v755 = vadd.f32 %v651, %v754
          %v756 = vpop.f32.mrb[0].mxu0
          %757 = vmatprep.mubr.bf16.mxu0 0
          %758 = vmatmul.mubr.bf16.gmra.mrb[0].mxu0 %v455
          %v759 = vpop.f32.mrb[0].mxu0
          %v760 = vadd.f32 %v651, %v759
          %v761 = vpop.f32.mrb[0].mxu0
          %v762 = vpop.f32.mrb[0].mxu0
          %v763 = vadd.f32 %v651, %v762
          %v764 = vpop.f32.mrb[0].mxu0
          %765 = vmatprep.mubr.bf16.mxu0 0
          %766 = vmatmul.mubr.bf16.gmra.mrb[0].mxu0 %v456
          %v767 = vpop.f32.mrb[0].mxu0
          %v768 = vadd.f32 %v651, %v767
          %v769 = vpop.f32.mrb[0].mxu0
          %v770 = vpop.f32.mrb[0].mxu0
          %v771 = vadd.f32 %v651, %v770
          %v772 = vpop.f32.mrb[0].mxu0
          %773 = vmatprep.mubr.bf16.mxu0 0
          %774 = vmatmul.mubr.bf16.gmra.mrb[0].mxu0 %v457
          %v775 = vpop.f32.mrb[0].mxu0
          %v776 = vadd.f32 %v651, %v775
          %v777 = vpop.f32.mrb[0].mxu0
          %v778 = vpop.f32.mrb[0].mxu0
          %v779 = vadd.f32 %v651, %v778
          %v780 = vpop.f32.mrb[0].mxu0
          %781 = vmatprep.mubr.bf16.mxu0 0
          %782 = vmatmul.mubr.bf16.gmra.mrb[0].mxu0 %v458
          %v783 = vpop.f32.mrb[0].mxu0
          %v784 = vadd.f32 %v651, %v783
          %v785 = vpop.f32.mrb[0].mxu0
          %v786 = vpop.f32.mrb[0].mxu0
          %v787 = vadd.f32 %v651, %v786
          %v788 = vpop.f32.mrb[0].mxu0
          %789 = vmatprep.mubr.bf16.mxu0 0
          %790 = vmatmul.mubr.bf16.gmra.mrb[0].mxu0 %v459
          %v791 = vpop.f32.mrb[0].mxu0
          %v792 = vadd.f32 %v651, %v791
          %v793 = vpop.f32.mrb[0].mxu0
          %v794 = vpop.f32.mrb[0].mxu0
          %v795 = vadd.f32 %v651, %v794
          %v796 = vpop.f32.mrb[0].mxu0
          %797 = vdwg.mxu0
          %s798 = scalar_lea.vmem %s9, %s379
          %799 = vst [vmem:[%s798] sm:$0xff] %v736
          %800 = vst [vmem:[%s798 + $0x8] sm:$0xff] %v739
          %801 = vst [vmem:[%s798 + $0x10] sm:$0xff] %v744
          %802 = vst [vmem:[%s798 + $0x18] sm:$0xff] %v747
          %803 = vst [vmem:[%s798 + $0x20] sm:$0xff] %v752
          %804 = vst [vmem:[%s798 + $0x28] sm:$0xff] %v755
          %805 = vst [vmem:[%s798 + $0x30] sm:$0xff] %v760
          %806 = vst [vmem:[%s798 + $0x38] sm:$0xff] %v763
          %807 = vst [vmem:[%s798 + $0x40] sm:$0xff] %v768
          %808 = vst [vmem:[%s798 + $0x48] sm:$0xff] %v771
          %809 = vst [vmem:[%s798 + $0x50] sm:$0xff] %v776
          %810 = vst [vmem:[%s798 + $0x58] sm:$0xff] %v779
          %811 = vst [vmem:[%s798 + $0x60] sm:$0xff] %v784
          %812 = vst [vmem:[%s798 + $0x68] sm:$0xff] %v787
          %813 = vst [vmem:[%s798 + $0x70] sm:$0xff] %v792
          %814 = vst [vmem:[%s798 + $0x78] sm:$0xff] %v795
          %v815 = vld [vmem:[#allocation7] sm:$0xf]
          %v816 = vld [vmem:[#allocation7 + $0x4] sm:$0xf]
          %v817 = vld [vmem:[#allocation7 + $0x8] sm:$0xf]
          %v818 = vld [vmem:[#allocation7 + $0xc] sm:$0xf]
          %v819 = vld [vmem:[#allocation7 + $0x10] sm:$0xf]
          %v820 = vld [vmem:[#allocation7 + $0x14] sm:$0xf]
          %v821 = vld [vmem:[#allocation7 + $0x18] sm:$0xf]
          %v822 = vld [vmem:[#allocation7 + $0x1c] sm:$0xf]
          %v823 = vld [vmem:[#allocation7 + $0x20] sm:$0xf]
          %v824 = vld [vmem:[#allocation7 + $0x24] sm:$0xf]
          %v825 = vld [vmem:[#allocation7 + $0x28] sm:$0xf]
          %v826 = vld [vmem:[#allocation7 + $0x2c] sm:$0xf]
          %v827 = vld [vmem:[#allocation7 + $0x30] sm:$0xf]
          %v828 = vld [vmem:[#allocation7 + $0x34] sm:$0xf]
          %v829 = vld [vmem:[#allocation7 + $0x38] sm:$0xf]
          %v830 = vld [vmem:[#allocation7 + $0x3c] sm:$0xf]
          %v831 = vld [vmem:[%s1] sm:$0xf]
          %v832 = vld [vmem:[%s1 + $0x4] sm:$0xf]
          %v833 = vld [vmem:[%s1 + $0x8] sm:$0xf]
          %v834 = vld [vmem:[%s1 + $0xc] sm:$0xf]
          %v835 = vld [vmem:[%s1 + $0x10] sm:$0xf]
          %v836 = vld [vmem:[%s1 + $0x14] sm:$0xf]
          %v837 = vld [vmem:[%s1 + $0x18] sm:$0xf]
          %v838 = vld [vmem:[%s1 + $0x1c] sm:$0xf]
          %v839 = vld [vmem:[%s1 + $0x20] sm:$0xf]
          %v840 = vld [vmem:[%s1 + $0x24] sm:$0xf]
          %v841 = vld [vmem:[%s1 + $0x28] sm:$0xf]
          %v842 = vld [vmem:[%s1 + $0x2c] sm:$0xf]
          %v843 = vld [vmem:[%s1 + $0x30] sm:$0xf]
          %v844 = vld [vmem:[%s1 + $0x34] sm:$0xf]
          %v845 = vld [vmem:[%s1 + $0x38] sm:$0xf]
          %v846 = vld [vmem:[%s1 + $0x3c] sm:$0xf]
          %v863 = vunpack.c.l.b16 %v815
          %v864 = vunpack.c.l.b16 %v816
          %v865 = vunpack.c.l.b16 %v817
          %v866 = vunpack.c.l.b16 %v818
          %v867 = vunpack.c.l.b16 %v819
          %v868 = vunpack.c.l.b16 %v820
          %v869 = vunpack.c.l.b16 %v821
          %v870 = vunpack.c.l.b16 %v822
          %v871 = vunpack.c.l.b16 %v823
          %v872 = vunpack.c.l.b16 %v824
          %v873 = vunpack.c.l.b16 %v825
          %v874 = vunpack.c.l.b16 %v826
          %v875 = vunpack.c.l.b16 %v827
          %v876 = vunpack.c.l.b16 %v828
          %v877 = vunpack.c.l.b16 %v829
          %v878 = vunpack.c.l.b16 %v830
          %v879 = vpack.c.b16 %v864, %v863
          %v880 = vpack.c.b16 %v866, %v865
          %v881 = vpack.c.b16 %v868, %v867
          %v882 = vpack.c.b16 %v870, %v869
          %v883 = vpack.c.b16 %v872, %v871
          %v884 = vpack.c.b16 %v874, %v873
          %v885 = vpack.c.b16 %v876, %v875
          %v886 = vpack.c.b16 %v878, %v877
          %v911 = vunpack.c.l.b16 %v831
          %v912 = vunpack.c.l.b16 %v832
          %v913 = vunpack.c.l.b16 %v833
          %v914 = vunpack.c.l.b16 %v834
          %v915 = vunpack.c.l.b16 %v835
          %v916 = vunpack.c.l.b16 %v836
          %v917 = vunpack.c.l.b16 %v837
          %v918 = vunpack.c.l.b16 %v838
          %v919 = vunpack.c.l.b16 %v839
          %v920 = vunpack.c.l.b16 %v840
          %v921 = vunpack.c.l.b16 %v841
          %v922 = vunpack.c.l.b16 %v842
          %v923 = vunpack.c.l.b16 %v843
          %v924 = vunpack.c.l.b16 %v844
          %v925 = vunpack.c.l.b16 %v845
          %v926 = vunpack.c.l.b16 %v846
          %v927 = vpack.c.b16 %v912, %v911
          %v928 = vpack.c.b16 %v914, %v913
          %v929 = vpack.c.b16 %v916, %v915
          %v930 = vpack.c.b16 %v918, %v917
          %v931 = vpack.c.b16 %v920, %v919
          %v932 = vpack.c.b16 %v922, %v921
          %v933 = vpack.c.b16 %v924, %v923
          %v934 = vpack.c.b16 %v926, %v925
          %943 = vmatprep.subr.bf16.mxu0 0
          %944 = vmatpush1.bf16.msra.mxu0 %v927
          %945 = vmatprep.subr.bf16.mxu0 0
          %946 = vmatpush1.bf16.msra.mxu0 %v928
          %947 = vmatprep.subr.bf16.mxu0 0
          %948 = vmatpush1.bf16.msra.mxu0 %v929
          %949 = vmatprep.subr.bf16.mxu0 0
          %950 = vmatpush1.bf16.msra.mxu0 %v930
          %951 = vmatprep.subr.bf16.mxu0 0
          %952 = vmatpush1.bf16.msra.mxu0 %v931
          %953 = vmatprep.subr.bf16.mxu0 0
          %954 = vmatpush1.bf16.msra.mxu0 %v932
          %955 = vmatprep.subr.bf16.mxu0 0
          %956 = vmatpush1.bf16.msra.mxu0 %v933
          %957 = vmatprep.subr.bf16.mxu0 0
          %958 = vmatpush1.bf16.msra.mxu0 %v934
          %959 = vmatprep.subr.bf16.mxu0 0
          %960 = vmatpush1.bf16.msra.mxu0 0
          %961 = vmatprep.subr.bf16.mxu0 0
          %962 = vmatpush1.bf16.msra.mxu0 0
          %963 = vmatprep.subr.bf16.mxu0 0
          %964 = vmatpush1.bf16.msra.mxu0 0
          %965 = vmatprep.subr.bf16.mxu0 0
          %966 = vmatpush1.bf16.msra.mxu0 0
          %967 = vmatprep.subr.bf16.mxu0 0
          %968 = vmatpush1.bf16.msra.mxu0 0
          %969 = vmatprep.subr.bf16.mxu0 0
          %970 = vmatpush1.bf16.msra.mxu0 0
          %971 = vmatprep.subr.bf16.mxu0 0
          %972 = vmatpush1.bf16.msra.mxu0 0
          %973 = vmatprep.subr.bf16.mxu0 0
          %974 = vmatpush1.bf16.msra.mxu0 0
          %975 = vmatprep.mubr.bf16.mxu0 0
          %976 = vmatmul.mubr.bf16.gmra.mrb[0].mxu0 %v879
          %v977 = vpop.f32.mrb[0].mxu0
          %v978 = vadd.f32 0.0, %v977
          %v979 = vpop.f32.mrb[0].mxu0
          %v980 = vpop.f32.mrb[0].mxu0
          %v981 = vadd.f32 0.0, %v980
          %v982 = vpop.f32.mrb[0].mxu0
          %983 = vmatprep.mubr.bf16.mxu0 0
          %984 = vmatmul.mubr.bf16.gmra.mrb[0].mxu0 %v880
          %v985 = vpop.f32.mrb[0].mxu0
          %v986 = vadd.f32 0.0, %v985
          %v987 = vpop.f32.mrb[0].mxu0
          %v988 = vpop.f32.mrb[0].mxu0
          %v989 = vadd.f32 0.0, %v988
          %v990 = vpop.f32.mrb[0].mxu0
          %991 = vmatprep.mubr.bf16.mxu0 0
          %992 = vmatmul.mubr.bf16.gmra.mrb[0].mxu0 %v881
          %v993 = vpop.f32.mrb[0].mxu0
          %v994 = vadd.f32 0.0, %v993
          %v995 = vpop.f32.mrb[0].mxu0
          %v996 = vpop.f32.mrb[0].mxu0
          %v997 = vadd.f32 0.0, %v996
          %v998 = vpop.f32.mrb[0].mxu0
          %999 = vmatprep.mubr.bf16.mxu0 0
          %1000 = vmatmul.mubr.bf16.gmra.mrb[0].mxu0 %v882
          %v1001 = vpop.f32.mrb[0].mxu0
          %v1002 = vadd.f32 0.0, %v1001
          %v1003 = vpop.f32.mrb[0].mxu0
          %v1004 = vpop.f32.mrb[0].mxu0
          %v1005 = vadd.f32 0.0, %v1004
          %v1006 = vpop.f32.mrb[0].mxu0
          %1007 = vmatprep.mubr.bf16.mxu0 0
          %1008 = vmatmul.mubr.bf16.gmra.mrb[0].mxu0 %v883
          %v1009 = vpop.f32.mrb[0].mxu0
          %v1010 = vadd.f32 0.0, %v1009
          %v1011 = vpop.f32.mrb[0].mxu0
          %v1012 = vpop.f32.mrb[0].mxu0
          %v1013 = vadd.f32 0.0, %v1012
          %v1014 = vpop.f32.mrb[0].mxu0
          %1015 = vmatprep.mubr.bf16.mxu0 0
          %1016 = vmatmul.mubr.bf16.gmra.mrb[0].mxu0 %v884
          %v1017 = vpop.f32.mrb[0].mxu0
          %v1018 = vadd.f32 0.0, %v1017
          %v1019 = vpop.f32.mrb[0].mxu0
          %v1020 = vpop.f32.mrb[0].mxu0
          %v1021 = vadd.f32 0.0, %v1020
          %v1022 = vpop.f32.mrb[0].mxu0
          %1023 = vmatprep.mubr.bf16.mxu0 0
          %1024 = vmatmul.mubr.bf16.gmra.mrb[0].mxu0 %v885
          %v1025 = vpop.f32.mrb[0].mxu0
          %v1026 = vadd.f32 0.0, %v1025
          %v1027 = vpop.f32.mrb[0].mxu0
          %v1028 = vpop.f32.mrb[0].mxu0
          %v1029 = vadd.f32 0.0, %v1028
          %v1030 = vpop.f32.mrb[0].mxu0
          %1031 = vmatprep.mubr.bf16.mxu0 0
          %1032 = vmatmul.mubr.bf16.gmra.mrb[0].mxu0 %v886
          %v1033 = vpop.f32.mrb[0].mxu0
          %v1034 = vadd.f32 0.0, %v1033
          %v1035 = vpop.f32.mrb[0].mxu0
          %v1036 = vpop.f32.mrb[0].mxu0
          %v1037 = vadd.f32 0.0, %v1036
          %v1038 = vpop.f32.mrb[0].mxu0
          %1039 = vdwg.mxu0
          %v1040 = vpack.c.bf16 %v981, %v978
          %v1041 = vpack.c.bf16 %v989, %v986
          %v1042 = vpack.c.bf16 %v997, %v994
          %v1043 = vpack.c.bf16 %v1005, %v1002
          %v1044 = vpack.c.bf16 %v1013, %v1010
          %v1045 = vpack.c.bf16 %v1021, %v1018
          %v1046 = vpack.c.bf16 %v1029, %v1026
          %v1047 = vpack.c.bf16 %v1037, %v1034
          %v1048 = vld [vmem:[%s613] sm:$0xff]
          %v1049 = vld [vmem:[%s613 + $0x8] sm:$0xff]
          %v1050 = vld [vmem:[%s613 + $0x10] sm:$0xff]
          %v1051 = vld [vmem:[%s613 + $0x18] sm:$0xff]
          %v1052 = vld [vmem:[%s613 + $0x20] sm:$0xff]
          %v1053 = vld [vmem:[%s613 + $0x28] sm:$0xff]
          %v1054 = vld [vmem:[%s613 + $0x30] sm:$0xff]
          %v1055 = vld [vmem:[%s613 + $0x38] sm:$0xff]
          %v1056 = vld [vmem:[%s613 + $0x40] sm:$0xff]
          %v1057 = vld [vmem:[%s613 + $0x48] sm:$0xff]
          %v1058 = vld [vmem:[%s613 + $0x50] sm:$0xff]
          %v1059 = vld [vmem:[%s613 + $0x58] sm:$0xff]
          %v1060 = vld [vmem:[%s613 + $0x60] sm:$0xff]
          %v1061 = vld [vmem:[%s613 + $0x68] sm:$0xff]
          %v1062 = vld [vmem:[%s613 + $0x70] sm:$0xff]
          %v1063 = vld [vmem:[%s613 + $0x78] sm:$0xff]
          %s1064 = scalar_lea.vmem %s2, 64
          %v1065 = vld [vmem:[%s1064] sm:$0xf]
          %v1066 = vld [vmem:[%s1064 + $0x4] sm:$0xf]
          %v1067 = vld [vmem:[%s1064 + $0x8] sm:$0xf]
          %v1068 = vld [vmem:[%s1064 + $0xc] sm:$0xf]
          %v1069 = vld [vmem:[%s1064 + $0x10] sm:$0xf]
          %v1070 = vld [vmem:[%s1064 + $0x14] sm:$0xf]
          %v1071 = vld [vmem:[%s1064 + $0x18] sm:$0xf]
          %v1072 = vld [vmem:[%s1064 + $0x1c] sm:$0xf]
          %v1073 = vld [vmem:[%s1064 + $0x20] sm:$0xf]
          %v1074 = vld [vmem:[%s1064 + $0x24] sm:$0xf]
          %v1075 = vld [vmem:[%s1064 + $0x28] sm:$0xf]
          %v1076 = vld [vmem:[%s1064 + $0x2c] sm:$0xf]
          %v1077 = vld [vmem:[%s1064 + $0x30] sm:$0xf]
          %v1078 = vld [vmem:[%s1064 + $0x34] sm:$0xf]
          %v1079 = vld [vmem:[%s1064 + $0x38] sm:$0xf]
          %v1080 = vld [vmem:[%s1064 + $0x3c] sm:$0xf]
          %v1097 = vunpack.c.l.b16 %v1065
          %v1098 = vunpack.c.l.b16 %v1066
          %v1099 = vunpack.c.l.b16 %v1067
          %v1100 = vunpack.c.l.b16 %v1068
          %v1101 = vunpack.c.l.b16 %v1069
          %v1102 = vunpack.c.l.b16 %v1070
          %v1103 = vunpack.c.l.b16 %v1071
          %v1104 = vunpack.c.l.b16 %v1072
          %v1105 = vunpack.c.l.b16 %v1073
          %v1106 = vunpack.c.l.b16 %v1074
          %v1107 = vunpack.c.l.b16 %v1075
          %v1108 = vunpack.c.l.b16 %v1076
          %v1109 = vunpack.c.l.b16 %v1077
          %v1110 = vunpack.c.l.b16 %v1078
          %v1111 = vunpack.c.l.b16 %v1079
          %v1112 = vunpack.c.l.b16 %v1080
          %v1113 = vpack.c.b16 %v1098, %v1097
          %v1114 = vpack.c.b16 %v1100, %v1099
          %v1115 = vpack.c.b16 %v1102, %v1101
          %v1116 = vpack.c.b16 %v1104, %v1103
          %v1117 = vpack.c.b16 %v1106, %v1105
          %v1118 = vpack.c.b16 %v1108, %v1107
          %v1119 = vpack.c.b16 %v1110, %v1109
          %v1120 = vpack.c.b16 %v1112, %v1111
          %1129 = vmatprep.subr.bf16.mxu0 0
          %1130 = vmatpush1.bf16.msra.mxu0 %v1113
          %1131 = vmatprep.subr.bf16.mxu0 0
          %1132 = vmatpush1.bf16.msra.mxu0 %v1114
          %1133 = vmatprep.subr.bf16.mxu0 0
          %1134 = vmatpush1.bf16.msra.mxu0 %v1115
          %1135 = vmatprep.subr.bf16.mxu0 0
          %1136 = vmatpush1.bf16.msra.mxu0 %v1116
          %1137 = vmatprep.subr.bf16.mxu0 0
          %1138 = vmatpush1.bf16.msra.mxu0 %v1117
          %1139 = vmatprep.subr.bf16.mxu0 0
          %1140 = vmatpush1.bf16.msra.mxu0 %v1118
          %1141 = vmatprep.subr.bf16.mxu0 0
          %1142 = vmatpush1.bf16.msra.mxu0 %v1119
          %1143 = vmatprep.subr.bf16.mxu0 0
          %1144 = vmatpush1.bf16.msra.mxu0 %v1120
          %1145 = vmatprep.subr.bf16.mxu0 0
          %1146 = vmatpush1.bf16.msra.mxu0 0
          %1147 = vmatprep.subr.bf16.mxu0 0
          %1148 = vmatpush1.bf16.msra.mxu0 0
          %1149 = vmatprep.subr.bf16.mxu0 0
          %1150 = vmatpush1.bf16.msra.mxu0 0
          %1151 = vmatprep.subr.bf16.mxu0 0
          %1152 = vmatpush1.bf16.msra.mxu0 0
          %1153 = vmatprep.subr.bf16.mxu0 0
          %1154 = vmatpush1.bf16.msra.mxu0 0
          %1155 = vmatprep.subr.bf16.mxu0 0
          %1156 = vmatpush1.bf16.msra.mxu0 0
          %1157 = vmatprep.subr.bf16.mxu0 0
          %1158 = vmatpush1.bf16.msra.mxu0 0
          %1159 = vmatprep.subr.bf16.mxu0 0
          %1160 = vmatpush1.bf16.msra.mxu0 0
          %1161 = vmatprep.mubr.bf16.mxu0 0
          %1162 = vmatmul.mubr.bf16.gmra.mrb[0].mxu0 %v1040
          %v1163 = vpop.f32.mrb[0].mxu0
          %v1164 = vadd.f32 0.0, %v1163
          %v1165 = vpop.f32.mrb[0].mxu0
          %v1166 = vpop.f32.mrb[0].mxu0
          %v1167 = vadd.f32 0.0, %v1166
          %v1168 = vpop.f32.mrb[0].mxu0
          %1169 = vmatprep.mubr.bf16.mxu0 0
          %1170 = vmatmul.mubr.bf16.gmra.mrb[0].mxu0 %v1041
          %v1171 = vpop.f32.mrb[0].mxu0
          %v1172 = vadd.f32 0.0, %v1171
          %v1173 = vpop.f32.mrb[0].mxu0
          %v1174 = vpop.f32.mrb[0].mxu0
          %v1175 = vadd.f32 0.0, %v1174
          %v1176 = vpop.f32.mrb[0].mxu0
          %1177 = vmatprep.mubr.bf16.mxu0 0
          %1178 = vmatmul.mubr.bf16.gmra.mrb[0].mxu0 %v1042
          %v1179 = vpop.f32.mrb[0].mxu0
          %v1180 = vadd.f32 0.0, %v1179
          %v1181 = vpop.f32.mrb[0].mxu0
          %v1182 = vpop.f32.mrb[0].mxu0
          %v1183 = vadd.f32 0.0, %v1182
          %v1184 = vpop.f32.mrb[0].mxu0
          %1185 = vmatprep.mubr.bf16.mxu0 0
          %1186 = vmatmul.mubr.bf16.gmra.mrb[0].mxu0 %v1043
          %v1187 = vpop.f32.mrb[0].mxu0
          %v1188 = vadd.f32 0.0, %v1187
          %v1189 = vpop.f32.mrb[0].mxu0
          %v1190 = vpop.f32.mrb[0].mxu0
          %v1191 = vadd.f32 0.0, %v1190
          %v1192 = vpop.f32.mrb[0].mxu0
          %1193 = vmatprep.mubr.bf16.mxu0 0
          %1194 = vmatmul.mubr.bf16.gmra.mrb[0].mxu0 %v1044
          %v1195 = vpop.f32.mrb[0].mxu0
          %v1196 = vadd.f32 0.0, %v1195
          %v1197 = vpop.f32.mrb[0].mxu0
          %v1198 = vpop.f32.mrb[0].mxu0
          %v1199 = vadd.f32 0.0, %v1198
          %v1200 = vpop.f32.mrb[0].mxu0
          %1201 = vmatprep.mubr.bf16.mxu0 0
          %1202 = vmatmul.mubr.bf16.gmra.mrb[0].mxu0 %v1045
          %v1203 = vpop.f32.mrb[0].mxu0
          %v1204 = vadd.f32 0.0, %v1203
          %v1205 = vpop.f32.mrb[0].mxu0
          %v1206 = vpop.f32.mrb[0].mxu0
          %v1207 = vadd.f32 0.0, %v1206
          %v1208 = vpop.f32.mrb[0].mxu0
          %1209 = vmatprep.mubr.bf16.mxu0 0
          %1210 = vmatmul.mubr.bf16.gmra.mrb[0].mxu0 %v1046
          %v1211 = vpop.f32.mrb[0].mxu0
          %v1212 = vadd.f32 0.0, %v1211
          %v1213 = vpop.f32.mrb[0].mxu0
          %v1214 = vpop.f32.mrb[0].mxu0
          %v1215 = vadd.f32 0.0, %v1214
          %v1216 = vpop.f32.mrb[0].mxu0
          %1217 = vmatprep.mubr.bf16.mxu0 0
          %1218 = vmatmul.mubr.bf16.gmra.mrb[0].mxu0 %v1047
          %v1219 = vpop.f32.mrb[0].mxu0
          %v1220 = vadd.f32 0.0, %v1219
          %v1221 = vpop.f32.mrb[0].mxu0
          %v1222 = vpop.f32.mrb[0].mxu0
          %v1223 = vadd.f32 0.0, %v1222
          %v1224 = vpop.f32.mrb[0].mxu0
          %1225 = vdwg.mxu0
          %v1226 = vadd.f32 %v1048, %v1164
          %v1227 = vadd.f32 %v1049, %v1167
          %v1228 = vadd.f32 %v1050, %v1172
          %v1229 = vadd.f32 %v1051, %v1175
          %v1230 = vadd.f32 %v1052, %v1180
          %v1231 = vadd.f32 %v1053, %v1183
          %v1232 = vadd.f32 %v1054, %v1188
          %v1233 = vadd.f32 %v1055, %v1191
          %v1234 = vadd.f32 %v1056, %v1196
          %v1235 = vadd.f32 %v1057, %v1199
          %v1236 = vadd.f32 %v1058, %v1204
          %v1237 = vadd.f32 %v1059, %v1207
          %v1238 = vadd.f32 %v1060, %v1212
          %v1239 = vadd.f32 %v1061, %v1215
          %v1240 = vadd.f32 %v1062, %v1220
          %v1241 = vadd.f32 %v1063, %v1223
          %1242 = vst [vmem:[%s613] sm:$0xff] %v1226
          %1243 = vst [vmem:[%s613 + $0x8] sm:$0xff] %v1227
          %1244 = vst [vmem:[%s613 + $0x10] sm:$0xff] %v1228
          %1245 = vst [vmem:[%s613 + $0x18] sm:$0xff] %v1229
          %1246 = vst [vmem:[%s613 + $0x20] sm:$0xff] %v1230
          %1247 = vst [vmem:[%s613 + $0x28] sm:$0xff] %v1231
          %1248 = vst [vmem:[%s613 + $0x30] sm:$0xff] %v1232
          %1249 = vst [vmem:[%s613 + $0x38] sm:$0xff] %v1233
          %1250 = vst [vmem:[%s613 + $0x40] sm:$0xff] %v1234
          %1251 = vst [vmem:[%s613 + $0x48] sm:$0xff] %v1235
          %1252 = vst [vmem:[%s613 + $0x50] sm:$0xff] %v1236
          %1253 = vst [vmem:[%s613 + $0x58] sm:$0xff] %v1237
          %1254 = vst [vmem:[%s613 + $0x60] sm:$0xff] %v1238
          %1255 = vst [vmem:[%s613 + $0x68] sm:$0xff] %v1239
          %1256 = vst [vmem:[%s613 + $0x70] sm:$0xff] %v1240
          %1257 = vst [vmem:[%s613 + $0x78] sm:$0xff] %v1241
          %v1258 = vld [vmem:[%s613] sm:$0xff]
          %v1259 = vld [vmem:[%s613 + $0x8] sm:$0xff]
          %v1260 = vld [vmem:[%s613 + $0x10] sm:$0xff]
          %v1261 = vld [vmem:[%s613 + $0x18] sm:$0xff]
          %v1262 = vld [vmem:[%s613 + $0x20] sm:$0xff]
          %v1263 = vld [vmem:[%s613 + $0x28] sm:$0xff]
          %v1264 = vld [vmem:[%s613 + $0x30] sm:$0xff]
          %v1265 = vld [vmem:[%s613 + $0x38] sm:$0xff]
          %v1266 = vld [vmem:[%s613 + $0x40] sm:$0xff]
          %v1267 = vld [vmem:[%s613 + $0x48] sm:$0xff]
          %v1268 = vld [vmem:[%s613 + $0x50] sm:$0xff]
          %v1269 = vld [vmem:[%s613 + $0x58] sm:$0xff]
          %v1270 = vld [vmem:[%s613 + $0x60] sm:$0xff]
          %v1271 = vld [vmem:[%s613 + $0x68] sm:$0xff]
          %v1272 = vld [vmem:[%s613 + $0x70] sm:$0xff]
          %v1273 = vld [vmem:[%s613 + $0x78] sm:$0xff]
          %v1274 = vld [vmem:[%s3] sm:$0x1]
          %v1276 = vlaneseq
          %v1277 = vshrl.u32 %v1276, 7
          %v1278 = vsub.s32 0, %v1277
          %v1279 = vrot.slane %v1274, %v1278
          %v1281 = vadd.f32 %v1258, %v1279
          %v1282 = vadd.f32 %v1259, %v1279
          %v1283 = vadd.f32 %v1260, %v1279
          %v1284 = vadd.f32 %v1261, %v1279
          %v1285 = vadd.f32 %v1262, %v1279
          %v1286 = vadd.f32 %v1263, %v1279
          %v1287 = vadd.f32 %v1264, %v1279
          %v1288 = vadd.f32 %v1265, %v1279
          %v1289 = vadd.f32 %v1266, %v1279
          %v1290 = vadd.f32 %v1267, %v1279
          %v1291 = vadd.f32 %v1268, %v1279
          %v1292 = vadd.f32 %v1269, %v1279
          %v1293 = vadd.f32 %v1270, %v1279
          %v1294 = vadd.f32 %v1271, %v1279
          %v1295 = vadd.f32 %v1272, %v1279
          %v1296 = vadd.f32 %v1273, %v1279
          %v1297 = vmax.f32 %v1281, 0.0
          %v1298 = vmax.f32 %v1282, 0.0
          %v1299 = vmax.f32 %v1283, 0.0
          %v1300 = vmax.f32 %v1284, 0.0
          %v1301 = vmax.f32 %v1285, 0.0
          %v1302 = vmax.f32 %v1286, 0.0
          %v1303 = vmax.f32 %v1287, 0.0
          %v1304 = vmax.f32 %v1288, 0.0
          %v1305 = vmax.f32 %v1289, 0.0
          %v1306 = vmax.f32 %v1290, 0.0
          %v1307 = vmax.f32 %v1291, 0.0
          %v1308 = vmax.f32 %v1292, 0.0
          %v1309 = vmax.f32 %v1293, 0.0
          %v1310 = vmax.f32 %v1294, 0.0
          %v1311 = vmax.f32 %v1295, 0.0
          %v1312 = vmax.f32 %v1296, 0.0
          %v1313 = vpack.c.bf16 %v1298, %v1297
          %v1314 = vpack.c.bf16 %v1300, %v1299
          %v1315 = vpack.c.bf16 %v1302, %v1301
          %v1316 = vpack.c.bf16 %v1304, %v1303
          %v1317 = vpack.c.bf16 %v1306, %v1305
          %v1318 = vpack.c.bf16 %v1308, %v1307
          %v1319 = vpack.c.bf16 %v1310, %v1309
          %v1320 = vpack.c.bf16 %v1312, %v1311
          %s1321 = sshra.s32 %s379, 4
          %s1322 = sand.u32 %s379, 15
          %s1323 = smul.addr %s1321, 8
          %s1324 = scalar_lea.vmem [#allocation3], %s1323
          %1325 = vst [vmem:[%s1324] sm:$0xff] %v1313
          %1326 = vst [vmem:[%s1324 + $0x8] sm:$0xff] %v1314
          %1327 = vst [vmem:[%s1324 + $0x10] sm:$0xff] %v1315
          %1328 = vst [vmem:[%s1324 + $0x18] sm:$0xff] %v1316
          %1329 = vst [vmem:[%s1324 + $0x20] sm:$0xff] %v1317
          %1330 = vst [vmem:[%s1324 + $0x28] sm:$0xff] %v1318
          %1331 = vst [vmem:[%s1324 + $0x30] sm:$0xff] %v1319
          %1332 = vst [vmem:[%s1324 + $0x38] sm:$0xff] %v1320
          %v1333 = vld [vmem:[#allocation9] sm:$0xf]
          %v1334 = vld [vmem:[#allocation9 + $0x4] sm:$0xf]
          %v1335 = vld [vmem:[#allocation9 + $0x8] sm:$0xf]
          %v1336 = vld [vmem:[#allocation9 + $0xc] sm:$0xf]
          %v1337 = vld [vmem:[#allocation9 + $0x10] sm:$0xf]
          %v1338 = vld [vmem:[#allocation9 + $0x14] sm:$0xf]
          %v1339 = vld [vmem:[#allocation9 + $0x18] sm:$0xf]
          %v1340 = vld [vmem:[#allocation9 + $0x1c] sm:$0xf]
          %v1341 = vld [vmem:[#allocation9 + $0x20] sm:$0xf]
          %v1342 = vld [vmem:[#allocation9 + $0x24] sm:$0xf]
          %v1343 = vld [vmem:[#allocation9 + $0x28] sm:$0xf]
          %v1344 = vld [vmem:[#allocation9 + $0x2c] sm:$0xf]
          %v1345 = vld [vmem:[#allocation9 + $0x30] sm:$0xf]
          %v1346 = vld [vmem:[#allocation9 + $0x34] sm:$0xf]
          %v1347 = vld [vmem:[#allocation9 + $0x38] sm:$0xf]
          %v1348 = vld [vmem:[#allocation9 + $0x3c] sm:$0xf]
          %v1365 = vunpack.c.l.b16 %v1333
          %v1366 = vunpack.c.l.b16 %v1334
          %v1367 = vunpack.c.l.b16 %v1335
          %v1368 = vunpack.c.l.b16 %v1336
          %v1369 = vunpack.c.l.b16 %v1337
          %v1370 = vunpack.c.l.b16 %v1338
          %v1371 = vunpack.c.l.b16 %v1339
          %v1372 = vunpack.c.l.b16 %v1340
          %v1373 = vunpack.c.l.b16 %v1341
          %v1374 = vunpack.c.l.b16 %v1342
          %v1375 = vunpack.c.l.b16 %v1343
          %v1376 = vunpack.c.l.b16 %v1344
          %v1377 = vunpack.c.l.b16 %v1345
          %v1378 = vunpack.c.l.b16 %v1346
          %v1379 = vunpack.c.l.b16 %v1347
          %v1380 = vunpack.c.l.b16 %v1348
          %v1381 = vpack.c.b16 %v1366, %v1365
          %v1382 = vpack.c.b16 %v1368, %v1367
          %v1383 = vpack.c.b16 %v1370, %v1369
          %v1384 = vpack.c.b16 %v1372, %v1371
          %v1385 = vpack.c.b16 %v1374, %v1373
          %v1386 = vpack.c.b16 %v1376, %v1375
          %v1387 = vpack.c.b16 %v1378, %v1377
          %v1388 = vpack.c.b16 %v1380, %v1379
          %1397 = vmatprep.subr.bf16.mxu0 0
          %1398 = vmatpush1.bf16.msra.mxu0 %v1381
          %1399 = vmatprep.subr.bf16.mxu0 0
          %1400 = vmatpush1.bf16.msra.mxu0 %v1382
          %1401 = vmatprep.subr.bf16.mxu0 0
          %1402 = vmatpush1.bf16.msra.mxu0 %v1383
          %1403 = vmatprep.subr.bf16.mxu0 0
          %1404 = vmatpush1.bf16.msra.mxu0 %v1384
          %1405 = vmatprep.subr.bf16.mxu0 0
          %1406 = vmatpush1.bf16.msra.mxu0 %v1385
          %1407 = vmatprep.subr.bf16.mxu0 0
          %1408 = vmatpush1.bf16.msra.mxu0 %v1386
          %1409 = vmatprep.subr.bf16.mxu0 0
          %1410 = vmatpush1.bf16.msra.mxu0 %v1387
          %1411 = vmatprep.subr.bf16.mxu0 0
          %1412 = vmatpush1.bf16.msra.mxu0 %v1388
          %1413 = vmatprep.subr.bf16.mxu0 0
          %1414 = vmatpush1.bf16.msra.mxu0 0
          %1415 = vmatprep.subr.bf16.mxu0 0
          %1416 = vmatpush1.bf16.msra.mxu0 0
          %1417 = vmatprep.subr.bf16.mxu0 0
          %1418 = vmatpush1.bf16.msra.mxu0 0
          %1419 = vmatprep.subr.bf16.mxu0 0
          %1420 = vmatpush1.bf16.msra.mxu0 0
          %1421 = vmatprep.subr.bf16.mxu0 0
          %1422 = vmatpush1.bf16.msra.mxu0 0
          %1423 = vmatprep.subr.bf16.mxu0 0
          %1424 = vmatpush1.bf16.msra.mxu0 0
          %1425 = vmatprep.subr.bf16.mxu0 0
          %1426 = vmatpush1.bf16.msra.mxu0 0
          %1427 = vmatprep.subr.bf16.mxu0 0
          %1428 = vmatpush1.bf16.msra.mxu0 0
          %1429 = vmatprep.mubr.bf16.mxu0 0
          %1430 = vmatmul.mubr.bf16.gmra.mrb[0].mxu0 %v1313
          %v1431 = vpop.f32.mrb[0].mxu0
          %v1432 = vadd.f32 0.0, %v1431
          %v1433 = vpop.f32.mrb[0].mxu0
          %v1434 = vpop.f32.mrb[0].mxu0
          %v1435 = vadd.f32 0.0, %v1434
          %v1436 = vpop.f32.mrb[0].mxu0
          %1437 = vmatprep.mubr.bf16.mxu0 0
          %1438 = vmatmul.mubr.bf16.gmra.mrb[0].mxu0 %v1314
          %v1439 = vpop.f32.mrb[0].mxu0
          %v1440 = vadd.f32 0.0, %v1439
          %v1441 = vpop.f32.mrb[0].mxu0
          %v1442 = vpop.f32.mrb[0].mxu0
          %v1443 = vadd.f32 0.0, %v1442
          %v1444 = vpop.f32.mrb[0].mxu0
          %1445 = vmatprep.mubr.bf16.mxu0 0
          %1446 = vmatmul.mubr.bf16.gmra.mrb[0].mxu0 %v1315
          %v1447 = vpop.f32.mrb[0].mxu0
          %v1448 = vadd.f32 0.0, %v1447
          %v1449 = vpop.f32.mrb[0].mxu0
          %v1450 = vpop.f32.mrb[0].mxu0
          %v1451 = vadd.f32 0.0, %v1450
          %v1452 = vpop.f32.mrb[0].mxu0
          %1453 = vmatprep.mubr.bf16.mxu0 0
          %1454 = vmatmul.mubr.bf16.gmra.mrb[0].mxu0 %v1316
          %v1455 = vpop.f32.mrb[0].mxu0
          %v1456 = vadd.f32 0.0, %v1455
          %v1457 = vpop.f32.mrb[0].mxu0
          %v1458 = vpop.f32.mrb[0].mxu0
          %v1459 = vadd.f32 0.0, %v1458
          %v1460 = vpop.f32.mrb[0].mxu0
          %1461 = vmatprep.mubr.bf16.mxu0 0
          %1462 = vmatmul.mubr.bf16.gmra.mrb[0].mxu0 %v1317
          %v1463 = vpop.f32.mrb[0].mxu0
          %v1464 = vadd.f32 0.0, %v1463
          %v1465 = vpop.f32.mrb[0].mxu0
          %v1466 = vpop.f32.mrb[0].mxu0
          %v1467 = vadd.f32 0.0, %v1466
          %v1468 = vpop.f32.mrb[0].mxu0
          %1469 = vmatprep.mubr.bf16.mxu0 0
          %1470 = vmatmul.mubr.bf16.gmra.mrb[0].mxu0 %v1318
          %v1471 = vpop.f32.mrb[0].mxu0
          %v1472 = vadd.f32 0.0, %v1471
          %v1473 = vpop.f32.mrb[0].mxu0
          %v1474 = vpop.f32.mrb[0].mxu0
          %v1475 = vadd.f32 0.0, %v1474
          %v1476 = vpop.f32.mrb[0].mxu0
          %1477 = vmatprep.mubr.bf16.mxu0 0
          %1478 = vmatmul.mubr.bf16.gmra.mrb[0].mxu0 %v1319
          %v1479 = vpop.f32.mrb[0].mxu0
          %v1480 = vadd.f32 0.0, %v1479
          %v1481 = vpop.f32.mrb[0].mxu0
          %v1482 = vpop.f32.mrb[0].mxu0
          %v1483 = vadd.f32 0.0, %v1482
          %v1484 = vpop.f32.mrb[0].mxu0
          %1485 = vmatprep.mubr.bf16.mxu0 0
          %1486 = vmatmul.mubr.bf16.gmra.mrb[0].mxu0 %v1320
          %v1487 = vpop.f32.mrb[0].mxu0
          %v1488 = vadd.f32 0.0, %v1487
          %v1489 = vpop.f32.mrb[0].mxu0
          %v1490 = vpop.f32.mrb[0].mxu0
          %v1491 = vadd.f32 0.0, %v1490
          %v1492 = vpop.f32.mrb[0].mxu0
          %1493 = vdwg.mxu0
          %s1494 = scalar_lea.vmem [#allocation6], %s379
          %1495 = vst [vmem:[%s1494] sm:$0xff] %v1432
          %1496 = vst [vmem:[%s1494 + $0x8] sm:$0xff] %v1435
          %1497 = vst [vmem:[%s1494 + $0x10] sm:$0xff] %v1440
          %1498 = vst [vmem:[%s1494 + $0x18] sm:$0xff] %v1443
          %1499 = vst [vmem:[%s1494 + $0x20] sm:$0xff] %v1448
          %1500 = vst [vmem:[%s1494 + $0x28] sm:$0xff] %v1451
          %1501 = vst [vmem:[%s1494 + $0x30] sm:$0xff] %v1456
          %1502 = vst [vmem:[%s1494 + $0x38] sm:$0xff] %v1459
          %1503 = vst [vmem:[%s1494 + $0x40] sm:$0xff] %v1464
          %1504 = vst [vmem:[%s1494 + $0x48] sm:$0xff] %v1467
          %1505 = vst [vmem:[%s1494 + $0x50] sm:$0xff] %v1472
          %1506 = vst [vmem:[%s1494 + $0x58] sm:$0xff] %v1475
          %1507 = vst [vmem:[%s1494 + $0x60] sm:$0xff] %v1480
          %1508 = vst [vmem:[%s1494 + $0x68] sm:$0xff] %v1483
          %1509 = vst [vmem:[%s1494 + $0x70] sm:$0xff] %v1488
          %1510 = vst [vmem:[%s1494 + $0x78] sm:$0xff] %v1491
        $region76: #{_forward.1} parent=55 // pred_fallthru
          _
        %p1511 = scmp.eq.s32.totalorder %s27, 1
        // Predicated region
        $region77: #{_forward.1} parent=55 // pred_check
          %p1512 = pneg %p1511
        $region78: #{_forward.1} parent=55 // pred_check_branch
          %1514 = sbr.rel (%p1512) target = $region80
        $region79: #{_forward.1} parent=55 // pred_region
          %v1515 = vld [vmem:[#allocation7] sm:$0xf]
          %v1516 = vld [vmem:[#allocation7 + $0x4] sm:$0xf]
          %v1517 = vld [vmem:[#allocation7 + $0x8] sm:$0xf]
          %v1518 = vld [vmem:[#allocation7 + $0xc] sm:$0xf]
          %v1519 = vld [vmem:[#allocation7 + $0x10] sm:$0xf]
          %v1520 = vld [vmem:[#allocation7 + $0x14] sm:$0xf]
          %v1521 = vld [vmem:[#allocation7 + $0x18] sm:$0xf]
          %v1522 = vld [vmem:[#allocation7 + $0x1c] sm:$0xf]
          %v1523 = vld [vmem:[#allocation7 + $0x20] sm:$0xf]
          %v1524 = vld [vmem:[#allocation7 + $0x24] sm:$0xf]
          %v1525 = vld [vmem:[#allocation7 + $0x28] sm:$0xf]
          %v1526 = vld [vmem:[#allocation7 + $0x2c] sm:$0xf]
          %v1527 = vld [vmem:[#allocation7 + $0x30] sm:$0xf]
          %v1528 = vld [vmem:[#allocation7 + $0x34] sm:$0xf]
          %v1529 = vld [vmem:[#allocation7 + $0x38] sm:$0xf]
          %v1530 = vld [vmem:[#allocation7 + $0x3c] sm:$0xf]
          %v1531 = vld [vmem:[#allocation3] sm:$0xff]
          %v1532 = vld [vmem:[#allocation3 + $0x8] sm:$0xff]
          %v1533 = vld [vmem:[#allocation3 + $0x10] sm:$0xff]
          %v1534 = vld [vmem:[#allocation3 + $0x18] sm:$0xff]
          %v1535 = vld [vmem:[#allocation3 + $0x20] sm:$0xff]
          %v1536 = vld [vmem:[#allocation3 + $0x28] sm:$0xff]
          %v1537 = vld [vmem:[#allocation3 + $0x30] sm:$0xff]
          %v1538 = vld [vmem:[#allocation3 + $0x38] sm:$0xff]
          %v1555 = vunpack.c.l.b16 %v1515
          %v1556 = vunpack.c.l.b16 %v1516
          %v1557 = vunpack.c.l.b16 %v1517
          %v1558 = vunpack.c.l.b16 %v1518
          %v1559 = vunpack.c.l.b16 %v1519
          %v1560 = vunpack.c.l.b16 %v1520
          %v1561 = vunpack.c.l.b16 %v1521
          %v1562 = vunpack.c.l.b16 %v1522
          %v1563 = vunpack.c.l.b16 %v1523
          %v1564 = vunpack.c.l.b16 %v1524
          %v1565 = vunpack.c.l.b16 %v1525
          %v1566 = vunpack.c.l.b16 %v1526
          %v1567 = vunpack.c.l.b16 %v1527
          %v1568 = vunpack.c.l.b16 %v1528
          %v1569 = vunpack.c.l.b16 %v1529
          %v1570 = vunpack.c.l.b16 %v1530
          %v1571 = vpack.c.b16 %v1556, %v1555
          %v1572 = vpack.c.b16 %v1558, %v1557
          %v1573 = vpack.c.b16 %v1560, %v1559
          %v1574 = vpack.c.b16 %v1562, %v1561
          %v1575 = vpack.c.b16 %v1564, %v1563
          %v1576 = vpack.c.b16 %v1566, %v1565
          %v1577 = vpack.c.b16 %v1568, %v1567
          %v1578 = vpack.c.b16 %v1570, %v1569
          %1587 = vmatprep.subr.bf16.mxu0 0
          %1588 = vmatpush1.bf16.msra.mxu0 %v1531
          %1589 = vmatprep.subr.bf16.mxu0 0
          %1590 = vmatpush1.bf16.msra.mxu0 %v1532
          %1591 = vmatprep.subr.bf16.mxu0 0
          %1592 = vmatpush1.bf16.msra.mxu0 %v1533
          %1593 = vmatprep.subr.bf16.mxu0 0
          %1594 = vmatpush1.bf16.msra.mxu0 %v1534
          %1595 = vmatprep.subr.bf16.mxu0 0
          %1596 = vmatpush1.bf16.msra.mxu0 %v1535
          %1597 = vmatprep.subr.bf16.mxu0 0
          %1598 = vmatpush1.bf16.msra.mxu0 %v1536
          %1599 = vmatprep.subr.bf16.mxu0 0
          %1600 = vmatpush1.bf16.msra.mxu0 %v1537
          %1601 = vmatprep.subr.bf16.mxu0 0
          %1602 = vmatpush1.bf16.msra.mxu0 %v1538
          %1603 = vmatprep.subr.bf16.mxu0 0
          %1604 = vmatpush1.bf16.msra.mxu0 0
          %1605 = vmatprep.subr.bf16.mxu0 0
          %1606 = vmatpush1.bf16.msra.mxu0 0
          %1607 = vmatprep.subr.bf16.mxu0 0
          %1608 = vmatpush1.bf16.msra.mxu0 0
          %1609 = vmatprep.subr.bf16.mxu0 0
          %1610 = vmatpush1.bf16.msra.mxu0 0
          %1611 = vmatprep.subr.bf16.mxu0 0
          %1612 = vmatpush1.bf16.msra.mxu0 0
          %1613 = vmatprep.subr.bf16.mxu0 0
          %1614 = vmatpush1.bf16.msra.mxu0 0
          %1615 = vmatprep.subr.bf16.mxu0 0
          %1616 = vmatpush1.bf16.msra.mxu0 0
          %1617 = vmatprep.subr.bf16.mxu0 0
          %1618 = vmatpush1.bf16.msra.mxu0 0
          %1619 = vmatprep.mubr.bf16.mxu0 0
          %1620 = vmatmul.mubr.bf16.gmra.mrb[0].mxu0 %v1571
          %v1621 = vpop.f32.mrb[0].mxu0
          %v1622 = vadd.f32 0.0, %v1621
          %v1623 = vpop.f32.mrb[0].mxu0
          %v1624 = vpop.f32.mrb[0].mxu0
          %v1625 = vadd.f32 0.0, %v1624
          %v1626 = vpop.f32.mrb[0].mxu0
          %1627 = vmatprep.mubr.bf16.mxu0 0
          %1628 = vmatmul.mubr.bf16.gmra.mrb[0].mxu0 %v1572
          %v1629 = vpop.f32.mrb[0].mxu0
          %v1630 = vadd.f32 0.0, %v1629
          %v1631 = vpop.f32.mrb[0].mxu0
          %v1632 = vpop.f32.mrb[0].mxu0
          %v1633 = vadd.f32 0.0, %v1632
          %v1634 = vpop.f32.mrb[0].mxu0
          %1635 = vmatprep.mubr.bf16.mxu0 0
          %1636 = vmatmul.mubr.bf16.gmra.mrb[0].mxu0 %v1573
          %v1637 = vpop.f32.mrb[0].mxu0
          %v1638 = vadd.f32 0.0, %v1637
          %v1639 = vpop.f32.mrb[0].mxu0
          %v1640 = vpop.f32.mrb[0].mxu0
          %v1641 = vadd.f32 0.0, %v1640
          %v1642 = vpop.f32.mrb[0].mxu0
          %1643 = vmatprep.mubr.bf16.mxu0 0
          %1644 = vmatmul.mubr.bf16.gmra.mrb[0].mxu0 %v1574
          %v1645 = vpop.f32.mrb[0].mxu0
          %v1646 = vadd.f32 0.0, %v1645
          %v1647 = vpop.f32.mrb[0].mxu0
          %v1648 = vpop.f32.mrb[0].mxu0
          %v1649 = vadd.f32 0.0, %v1648
          %v1650 = vpop.f32.mrb[0].mxu0
          %1651 = vmatprep.mubr.bf16.mxu0 0
          %1652 = vmatmul.mubr.bf16.gmra.mrb[0].mxu0 %v1575
          %v1653 = vpop.f32.mrb[0].mxu0
          %v1654 = vadd.f32 0.0, %v1653
          %v1655 = vpop.f32.mrb[0].mxu0
          %v1656 = vpop.f32.mrb[0].mxu0
          %v1657 = vadd.f32 0.0, %v1656
          %v1658 = vpop.f32.mrb[0].mxu0
          %1659 = vmatprep.mubr.bf16.mxu0 0
          %1660 = vmatmul.mubr.bf16.gmra.mrb[0].mxu0 %v1576
          %v1661 = vpop.f32.mrb[0].mxu0
          %v1662 = vadd.f32 0.0, %v1661
          %v1663 = vpop.f32.mrb[0].mxu0
          %v1664 = vpop.f32.mrb[0].mxu0
          %v1665 = vadd.f32 0.0, %v1664
          %v1666 = vpop.f32.mrb[0].mxu0
          %1667 = vmatprep.mubr.bf16.mxu0 0
          %1668 = vmatmul.mubr.bf16.gmra.mrb[0].mxu0 %v1577
          %v1669 = vpop.f32.mrb[0].mxu0
          %v1670 = vadd.f32 0.0, %v1669
          %v1671 = vpop.f32.mrb[0].mxu0
          %v1672 = vpop.f32.mrb[0].mxu0
          %v1673 = vadd.f32 0.0, %v1672
          %v1674 = vpop.f32.mrb[0].mxu0
          %1675 = vmatprep.mubr.bf16.mxu0 0
          %1676 = vmatmul.mubr.bf16.gmra.mrb[0].mxu0 %v1578
          %v1677 = vpop.f32.mrb[0].mxu0
          %v1678 = vadd.f32 0.0, %v1677
          %v1679 = vpop.f32.mrb[0].mxu0
          %v1680 = vpop.f32.mrb[0].mxu0
          %v1681 = vadd.f32 0.0, %v1680
          %v1682 = vpop.f32.mrb[0].mxu0
          %1683 = vdwg.mxu0
          %v1684 = vpack.c.bf16 %v1625, %v1622
          %v1685 = vpack.c.bf16 %v1633, %v1630
          %v1686 = vpack.c.bf16 %v1641, %v1638
          %v1687 = vpack.c.bf16 %v1649, %v1646
          %v1688 = vpack.c.bf16 %v1657, %v1654
          %v1689 = vpack.c.bf16 %v1665, %v1662
          %v1690 = vpack.c.bf16 %v1673, %v1670
          %v1691 = vpack.c.bf16 %v1681, %v1678
          %s1692 = scalar_lea.vmem [#allocation6], %s379
          %v1693 = vld [vmem:[%s1692] sm:$0xff]
          %v1694 = vld [vmem:[%s1692 + $0x8] sm:$0xff]
          %v1695 = vld [vmem:[%s1692 + $0x10] sm:$0xff]
          %v1696 = vld [vmem:[%s1692 + $0x18] sm:$0xff]
          %v1697 = vld [vmem:[%s1692 + $0x20] sm:$0xff]
          %v1698 = vld [vmem:[%s1692 + $0x28] sm:$0xff]
          %v1699 = vld [vmem:[%s1692 + $0x30] sm:$0xff]
          %v1700 = vld [vmem:[%s1692 + $0x38] sm:$0xff]
          %v1701 = vld [vmem:[%s1692 + $0x40] sm:$0xff]
          %v1702 = vld [vmem:[%s1692 + $0x48] sm:$0xff]
          %v1703 = vld [vmem:[%s1692 + $0x50] sm:$0xff]
          %v1704 = vld [vmem:[%s1692 + $0x58] sm:$0xff]
          %v1705 = vld [vmem:[%s1692 + $0x60] sm:$0xff]
          %v1706 = vld [vmem:[%s1692 + $0x68] sm:$0xff]
          %v1707 = vld [vmem:[%s1692 + $0x70] sm:$0xff]
          %v1708 = vld [vmem:[%s1692 + $0x78] sm:$0xff]
          %s1709 = scalar_lea.vmem [#allocation9], 64
          %v1710 = vld [vmem:[%s1709] sm:$0xf]
          %v1711 = vld [vmem:[%s1709 + $0x4] sm:$0xf]
          %v1712 = vld [vmem:[%s1709 + $0x8] sm:$0xf]
          %v1713 = vld [vmem:[%s1709 + $0xc] sm:$0xf]
          %v1714 = vld [vmem:[%s1709 + $0x10] sm:$0xf]
          %v1715 = vld [vmem:[%s1709 + $0x14] sm:$0xf]
          %v1716 = vld [vmem:[%s1709 + $0x18] sm:$0xf]
          %v1717 = vld [vmem:[%s1709 + $0x1c] sm:$0xf]
          %v1718 = vld [vmem:[%s1709 + $0x20] sm:$0xf]
          %v1719 = vld [vmem:[%s1709 + $0x24] sm:$0xf]
          %v1720 = vld [vmem:[%s1709 + $0x28] sm:$0xf]
          %v1721 = vld [vmem:[%s1709 + $0x2c] sm:$0xf]
          %v1722 = vld [vmem:[%s1709 + $0x30] sm:$0xf]
          %v1723 = vld [vmem:[%s1709 + $0x34] sm:$0xf]
          %v1724 = vld [vmem:[%s1709 + $0x38] sm:$0xf]
          %v1725 = vld [vmem:[%s1709 + $0x3c] sm:$0xf]
          %v1742 = vunpack.c.l.b16 %v1710
          %v1743 = vunpack.c.l.b16 %v1711
          %v1744 = vunpack.c.l.b16 %v1712
          %v1745 = vunpack.c.l.b16 %v1713
          %v1746 = vunpack.c.l.b16 %v1714
          %v1747 = vunpack.c.l.b16 %v1715
          %v1748 = vunpack.c.l.b16 %v1716
          %v1749 = vunpack.c.l.b16 %v1717
          %v1750 = vunpack.c.l.b16 %v1718
          %v1751 = vunpack.c.l.b16 %v1719
          %v1752 = vunpack.c.l.b16 %v1720
          %v1753 = vunpack.c.l.b16 %v1721
          %v1754 = vunpack.c.l.b16 %v1722
          %v1755 = vunpack.c.l.b16 %v1723
          %v1756 = vunpack.c.l.b16 %v1724
          %v1757 = vunpack.c.l.b16 %v1725
          %v1758 = vpack.c.b16 %v1743, %v1742
          %v1759 = vpack.c.b16 %v1745, %v1744
          %v1760 = vpack.c.b16 %v1747, %v1746
          %v1761 = vpack.c.b16 %v1749, %v1748
          %v1762 = vpack.c.b16 %v1751, %v1750
          %v1763 = vpack.c.b16 %v1753, %v1752
          %v1764 = vpack.c.b16 %v1755, %v1754
          %v1765 = vpack.c.b16 %v1757, %v1756
          %1774 = vmatprep.subr.bf16.mxu0 0
          %1775 = vmatpush1.bf16.msra.mxu0 %v1758
          %1776 = vmatprep.subr.bf16.mxu0 0
          %1777 = vmatpush1.bf16.msra.mxu0 %v1759
          %1778 = vmatprep.subr.bf16.mxu0 0
          %1779 = vmatpush1.bf16.msra.mxu0 %v1760
          %1780 = vmatprep.subr.bf16.mxu0 0
          %1781 = vmatpush1.bf16.msra.mxu0 %v1761
          %1782 = vmatprep.subr.bf16.mxu0 0
          %1783 = vmatpush1.bf16.msra.mxu0 %v1762
          %1784 = vmatprep.subr.bf16.mxu0 0
          %1785 = vmatpush1.bf16.msra.mxu0 %v1763
          %1786 = vmatprep.subr.bf16.mxu0 0
          %1787 = vmatpush1.bf16.msra.mxu0 %v1764
          %1788 = vmatprep.subr.bf16.mxu0 0
          %1789 = vmatpush1.bf16.msra.mxu0 %v1765
          %1790 = vmatprep.subr.bf16.mxu0 0
          %1791 = vmatpush1.bf16.msra.mxu0 0
          %1792 = vmatprep.subr.bf16.mxu0 0
          %1793 = vmatpush1.bf16.msra.mxu0 0
          %1794 = vmatprep.subr.bf16.mxu0 0
          %1795 = vmatpush1.bf16.msra.mxu0 0
          %1796 = vmatprep.subr.bf16.mxu0 0
          %1797 = vmatpush1.bf16.msra.mxu0 0
          %1798 = vmatprep.subr.bf16.mxu0 0
          %1799 = vmatpush1.bf16.msra.mxu0 0
          %1800 = vmatprep.subr.bf16.mxu0 0
          %1801 = vmatpush1.bf16.msra.mxu0 0
          %1802 = vmatprep.subr.bf16.mxu0 0
          %1803 = vmatpush1.bf16.msra.mxu0 0
          %1804 = vmatprep.subr.bf16.mxu0 0
          %1805 = vmatpush1.bf16.msra.mxu0 0
          %1806 = vmatprep.mubr.bf16.mxu0 0
          %1807 = vmatmul.mubr.bf16.gmra.mrb[0].mxu0 %v1684
          %v1808 = vpop.f32.mrb[0].mxu0
          %v1809 = vadd.f32 0.0, %v1808
          %v1810 = vpop.f32.mrb[0].mxu0
          %v1811 = vpop.f32.mrb[0].mxu0
          %v1812 = vadd.f32 0.0, %v1811
          %v1813 = vpop.f32.mrb[0].mxu0
          %1814 = vmatprep.mubr.bf16.mxu0 0
          %1815 = vmatmul.mubr.bf16.gmra.mrb[0].mxu0 %v1685
          %v1816 = vpop.f32.mrb[0].mxu0
          %v1817 = vadd.f32 0.0, %v1816
          %v1818 = vpop.f32.mrb[0].mxu0
          %v1819 = vpop.f32.mrb[0].mxu0
          %v1820 = vadd.f32 0.0, %v1819
          %v1821 = vpop.f32.mrb[0].mxu0
          %1822 = vmatprep.mubr.bf16.mxu0 0
          %1823 = vmatmul.mubr.bf16.gmra.mrb[0].mxu0 %v1686
          %v1824 = vpop.f32.mrb[0].mxu0
          %v1825 = vadd.f32 0.0, %v1824
          %v1826 = vpop.f32.mrb[0].mxu0
          %v1827 = vpop.f32.mrb[0].mxu0
          %v1828 = vadd.f32 0.0, %v1827
          %v1829 = vpop.f32.mrb[0].mxu0
          %1830 = vmatprep.mubr.bf16.mxu0 0
          %1831 = vmatmul.mubr.bf16.gmra.mrb[0].mxu0 %v1687
          %v1832 = vpop.f32.mrb[0].mxu0
          %v1833 = vadd.f32 0.0, %v1832
          %v1834 = vpop.f32.mrb[0].mxu0
          %v1835 = vpop.f32.mrb[0].mxu0
          %v1836 = vadd.f32 0.0, %v1835
          %v1837 = vpop.f32.mrb[0].mxu0
          %1838 = vmatprep.mubr.bf16.mxu0 0
          %1839 = vmatmul.mubr.bf16.gmra.mrb[0].mxu0 %v1688
          %v1840 = vpop.f32.mrb[0].mxu0
          %v1841 = vadd.f32 0.0, %v1840
          %v1842 = vpop.f32.mrb[0].mxu0
          %v1843 = vpop.f32.mrb[0].mxu0
          %v1844 = vadd.f32 0.0, %v1843
          %v1845 = vpop.f32.mrb[0].mxu0
          %1846 = vmatprep.mubr.bf16.mxu0 0
          %1847 = vmatmul.mubr.bf16.gmra.mrb[0].mxu0 %v1689
          %v1848 = vpop.f32.mrb[0].mxu0
          %v1849 = vadd.f32 0.0, %v1848
          %v1850 = vpop.f32.mrb[0].mxu0
          %v1851 = vpop.f32.mrb[0].mxu0
          %v1852 = vadd.f32 0.0, %v1851
          %v1853 = vpop.f32.mrb[0].mxu0
          %1854 = vmatprep.mubr.bf16.mxu0 0
          %1855 = vmatmul.mubr.bf16.gmra.mrb[0].mxu0 %v1690
          %v1856 = vpop.f32.mrb[0].mxu0
          %v1857 = vadd.f32 0.0, %v1856
          %v1858 = vpop.f32.mrb[0].mxu0
          %v1859 = vpop.f32.mrb[0].mxu0
          %v1860 = vadd.f32 0.0, %v1859
          %v1861 = vpop.f32.mrb[0].mxu0
          %1862 = vmatprep.mubr.bf16.mxu0 0
          %1863 = vmatmul.mubr.bf16.gmra.mrb[0].mxu0 %v1691
          %v1864 = vpop.f32.mrb[0].mxu0
          %v1865 = vadd.f32 0.0, %v1864
          %v1866 = vpop.f32.mrb[0].mxu0
          %v1867 = vpop.f32.mrb[0].mxu0
          %v1868 = vadd.f32 0.0, %v1867
          %v1869 = vpop.f32.mrb[0].mxu0
          %1870 = vdwg.mxu0
          %v1871 = vadd.f32 %v1693, %v1809
          %v1872 = vadd.f32 %v1694, %v1812
          %v1873 = vadd.f32 %v1695, %v1817
          %v1874 = vadd.f32 %v1696, %v1820
          %v1875 = vadd.f32 %v1697, %v1825
          %v1876 = vadd.f32 %v1698, %v1828
          %v1877 = vadd.f32 %v1699, %v1833
          %v1878 = vadd.f32 %v1700, %v1836
          %v1879 = vadd.f32 %v1701, %v1841
          %v1880 = vadd.f32 %v1702, %v1844
          %v1881 = vadd.f32 %v1703, %v1849
          %v1882 = vadd.f32 %v1704, %v1852
          %v1883 = vadd.f32 %v1705, %v1857
          %v1884 = vadd.f32 %v1706, %v1860
          %v1885 = vadd.f32 %v1707, %v1865
          %v1886 = vadd.f32 %v1708, %v1868
          %1887 = vst [vmem:[%s1692] sm:$0xff] %v1871
          %1888 = vst [vmem:[%s1692 + $0x8] sm:$0xff] %v1872
          %1889 = vst [vmem:[%s1692 + $0x10] sm:$0xff] %v1873
          %1890 = vst [vmem:[%s1692 + $0x18] sm:$0xff] %v1874
          %1891 = vst [vmem:[%s1692 + $0x20] sm:$0xff] %v1875
          %1892 = vst [vmem:[%s1692 + $0x28] sm:$0xff] %v1876
          %1893 = vst [vmem:[%s1692 + $0x30] sm:$0xff] %v1877
          %1894 = vst [vmem:[%s1692 + $0x38] sm:$0xff] %v1878
          %1895 = vst [vmem:[%s1692 + $0x40] sm:$0xff] %v1879
          %1896 = vst [vmem:[%s1692 + $0x48] sm:$0xff] %v1880
          %1897 = vst [vmem:[%s1692 + $0x50] sm:$0xff] %v1881
          %1898 = vst [vmem:[%s1692 + $0x58] sm:$0xff] %v1882
          %1899 = vst [vmem:[%s1692 + $0x60] sm:$0xff] %v1883
          %1900 = vst [vmem:[%s1692 + $0x68] sm:$0xff] %v1884
          %1901 = vst [vmem:[%s1692 + $0x70] sm:$0xff] %v1885
          %1902 = vst [vmem:[%s1692 + $0x78] sm:$0xff] %v1886
          %v1903 = vld [vmem:[%s1692] sm:$0xff]
          %v1904 = vld [vmem:[%s1692 + $0x8] sm:$0xff]
          %v1905 = vld [vmem:[%s1692 + $0x10] sm:$0xff]
          %v1906 = vld [vmem:[%s1692 + $0x18] sm:$0xff]
          %v1907 = vld [vmem:[%s1692 + $0x20] sm:$0xff]
          %v1908 = vld [vmem:[%s1692 + $0x28] sm:$0xff]
          %v1909 = vld [vmem:[%s1692 + $0x30] sm:$0xff]
          %v1910 = vld [vmem:[%s1692 + $0x38] sm:$0xff]
          %v1911 = vld [vmem:[%s1692 + $0x40] sm:$0xff]
          %v1912 = vld [vmem:[%s1692 + $0x48] sm:$0xff]
          %v1913 = vld [vmem:[%s1692 + $0x50] sm:$0xff]
          %v1914 = vld [vmem:[%s1692 + $0x58] sm:$0xff]
          %v1915 = vld [vmem:[%s1692 + $0x60] sm:$0xff]
          %v1916 = vld [vmem:[%s1692 + $0x68] sm:$0xff]
          %v1917 = vld [vmem:[%s1692 + $0x70] sm:$0xff]
          %v1918 = vld [vmem:[%s1692 + $0x78] sm:$0xff]
          %v1919 = vld [vmem:[%s5] sm:$0x1]
          %v1921 = vlaneseq
          %v1922 = vshrl.u32 %v1921, 7
          %v1923 = vsub.s32 0, %v1922
          %v1924 = vrot.slane %v1919, %v1923
          %v1926 = vadd.f32 %v1903, %v1924
          %v1927 = vadd.f32 %v1904, %v1924
          %v1928 = vadd.f32 %v1905, %v1924
          %v1929 = vadd.f32 %v1906, %v1924
          %v1930 = vadd.f32 %v1907, %v1924
          %v1931 = vadd.f32 %v1908, %v1924
          %v1932 = vadd.f32 %v1909, %v1924
          %v1933 = vadd.f32 %v1910, %v1924
          %v1934 = vadd.f32 %v1911, %v1924
          %v1935 = vadd.f32 %v1912, %v1924
          %v1936 = vadd.f32 %v1913, %v1924
          %v1937 = vadd.f32 %v1914, %v1924
          %v1938 = vadd.f32 %v1915, %v1924
          %v1939 = vadd.f32 %v1916, %v1924
          %v1940 = vadd.f32 %v1917, %v1924
          %v1941 = vadd.f32 %v1918, %v1924
          %v1942 = vmax.f32 %v1926, 0.0
          %v1943 = vmax.f32 %v1927, 0.0
          %v1944 = vmax.f32 %v1928, 0.0
          %v1945 = vmax.f32 %v1929, 0.0
          %v1946 = vmax.f32 %v1930, 0.0
          %v1947 = vmax.f32 %v1931, 0.0
          %v1948 = vmax.f32 %v1932, 0.0
          %v1949 = vmax.f32 %v1933, 0.0
          %v1950 = vmax.f32 %v1934, 0.0
          %v1951 = vmax.f32 %v1935, 0.0
          %v1952 = vmax.f32 %v1936, 0.0
          %v1953 = vmax.f32 %v1937, 0.0
          %v1954 = vmax.f32 %v1938, 0.0
          %v1955 = vmax.f32 %v1939, 0.0
          %v1956 = vmax.f32 %v1940, 0.0
          %v1957 = vmax.f32 %v1941, 0.0
          %v1958 = vpack.c.bf16 %v1943, %v1942
          %v1959 = vpack.c.bf16 %v1945, %v1944
          %v1960 = vpack.c.bf16 %v1947, %v1946
          %v1961 = vpack.c.bf16 %v1949, %v1948
          %v1962 = vpack.c.bf16 %v1951, %v1950
          %v1963 = vpack.c.bf16 %v1953, %v1952
          %v1964 = vpack.c.bf16 %v1955, %v1954
          %v1965 = vpack.c.bf16 %v1957, %v1956
          %s1966 = scalar_lea.vmem %s9, %s379
          %v1967 = vld [vmem:[%s1966] sm:$0xff]
          %v1968 = vld [vmem:[%s1966 + $0x8] sm:$0xff]
          %v1969 = vld [vmem:[%s1966 + $0x10] sm:$0xff]
          %v1970 = vld [vmem:[%s1966 + $0x18] sm:$0xff]
          %v1971 = vld [vmem:[%s1966 + $0x20] sm:$0xff]
          %v1972 = vld [vmem:[%s1966 + $0x28] sm:$0xff]
          %v1973 = vld [vmem:[%s1966 + $0x30] sm:$0xff]
          %v1974 = vld [vmem:[%s1966 + $0x38] sm:$0xff]
          %v1975 = vld [vmem:[%s1966 + $0x40] sm:$0xff]
          %v1976 = vld [vmem:[%s1966 + $0x48] sm:$0xff]
          %v1977 = vld [vmem:[%s1966 + $0x50] sm:$0xff]
          %v1978 = vld [vmem:[%s1966 + $0x58] sm:$0xff]
          %v1979 = vld [vmem:[%s1966 + $0x60] sm:$0xff]
          %v1980 = vld [vmem:[%s1966 + $0x68] sm:$0xff]
          %v1981 = vld [vmem:[%s1966 + $0x70] sm:$0xff]
          %v1982 = vld [vmem:[%s1966 + $0x78] sm:$0xff]
          %v1983 = vld [vmem:[#allocation11] sm:$0xf]
          %v1984 = vld [vmem:[#allocation11 + $0x4] sm:$0xf]
          %v1985 = vld [vmem:[#allocation11 + $0x8] sm:$0xf]
          %v1986 = vld [vmem:[#allocation11 + $0xc] sm:$0xf]
          %v1987 = vld [vmem:[#allocation11 + $0x10] sm:$0xf]
          %v1988 = vld [vmem:[#allocation11 + $0x14] sm:$0xf]
          %v1989 = vld [vmem:[#allocation11 + $0x18] sm:$0xf]
          %v1990 = vld [vmem:[#allocation11 + $0x1c] sm:$0xf]
          %v1991 = vld [vmem:[#allocation11 + $0x20] sm:$0xf]
          %v1992 = vld [vmem:[#allocation11 + $0x24] sm:$0xf]
          %v1993 = vld [vmem:[#allocation11 + $0x28] sm:$0xf]
          %v1994 = vld [vmem:[#allocation11 + $0x2c] sm:$0xf]
          %v1995 = vld [vmem:[#allocation11 + $0x30] sm:$0xf]
          %v1996 = vld [vmem:[#allocation11 + $0x34] sm:$0xf]
          %v1997 = vld [vmem:[#allocation11 + $0x38] sm:$0xf]
          %v1998 = vld [vmem:[#allocation11 + $0x3c] sm:$0xf]
          %v2015 = vunpack.c.l.b16 %v1983
          %v2016 = vunpack.c.l.b16 %v1984
          %v2017 = vunpack.c.l.b16 %v1985
          %v2018 = vunpack.c.l.b16 %v1986
          %v2019 = vunpack.c.l.b16 %v1987
          %v2020 = vunpack.c.l.b16 %v1988
          %v2021 = vunpack.c.l.b16 %v1989
          %v2022 = vunpack.c.l.b16 %v1990
          %v2023 = vunpack.c.l.b16 %v1991
          %v2024 = vunpack.c.l.b16 %v1992
          %v2025 = vunpack.c.l.b16 %v1993
          %v2026 = vunpack.c.l.b16 %v1994
          %v2027 = vunpack.c.l.b16 %v1995
          %v2028 = vunpack.c.l.b16 %v1996
          %v2029 = vunpack.c.l.b16 %v1997
          %v2030 = vunpack.c.l.b16 %v1998
          %v2031 = vpack.c.b16 %v2016, %v2015
          %v2032 = vpack.c.b16 %v2018, %v2017
          %v2033 = vpack.c.b16 %v2020, %v2019
          %v2034 = vpack.c.b16 %v2022, %v2021
          %v2035 = vpack.c.b16 %v2024, %v2023
          %v2036 = vpack.c.b16 %v2026, %v2025
          %v2037 = vpack.c.b16 %v2028, %v2027
          %v2038 = vpack.c.b16 %v2030, %v2029
          %2047 = vmatprep.subr.bf16.mxu0 0
          %2048 = vmatpush1.bf16.msra.mxu0 %v2031
          %2049 = vmatprep.subr.bf16.mxu0 0
          %2050 = vmatpush1.bf16.msra.mxu0 %v2032
          %2051 = vmatprep.subr.bf16.mxu0 0
          %2052 = vmatpush1.bf16.msra.mxu0 %v2033
          %2053 = vmatprep.subr.bf16.mxu0 0
          %2054 = vmatpush1.bf16.msra.mxu0 %v2034
          %2055 = vmatprep.subr.bf16.mxu0 0
          %2056 = vmatpush1.bf16.msra.mxu0 %v2035
          %2057 = vmatprep.subr.bf16.mxu0 0
          %2058 = vmatpush1.bf16.msra.mxu0 %v2036
          %2059 = vmatprep.subr.bf16.mxu0 0
          %2060 = vmatpush1.bf16.msra.mxu0 %v2037
          %2061 = vmatprep.subr.bf16.mxu0 0
          %2062 = vmatpush1.bf16.msra.mxu0 %v2038
          %2063 = vmatprep.subr.bf16.mxu0 0
          %2064 = vmatpush1.bf16.msra.mxu0 0
          %2065 = vmatprep.subr.bf16.mxu0 0
          %2066 = vmatpush1.bf16.msra.mxu0 0
          %2067 = vmatprep.subr.bf16.mxu0 0
          %2068 = vmatpush1.bf16.msra.mxu0 0
          %2069 = vmatprep.subr.bf16.mxu0 0
          %2070 = vmatpush1.bf16.msra.mxu0 0
          %2071 = vmatprep.subr.bf16.mxu0 0
          %2072 = vmatpush1.bf16.msra.mxu0 0
          %2073 = vmatprep.subr.bf16.mxu0 0
          %2074 = vmatpush1.bf16.msra.mxu0 0
          %2075 = vmatprep.subr.bf16.mxu0 0
          %2076 = vmatpush1.bf16.msra.mxu0 0
          %2077 = vmatprep.subr.bf16.mxu0 0
          %2078 = vmatpush1.bf16.msra.mxu0 0
          %2079 = vmatprep.mubr.bf16.mxu0 0
          %2080 = vmatmul.mubr.bf16.gmra.mrb[0].mxu0 %v1958
          %v2081 = vpop.f32.mrb[0].mxu0
          %v2082 = vadd.f32 0.0, %v2081
          %v2083 = vpop.f32.mrb[0].mxu0
          %v2084 = vpop.f32.mrb[0].mxu0
          %v2085 = vadd.f32 0.0, %v2084
          %v2086 = vpop.f32.mrb[0].mxu0
          %2087 = vmatprep.mubr.bf16.mxu0 0
          %2088 = vmatmul.mubr.bf16.gmra.mrb[0].mxu0 %v1959
          %v2089 = vpop.f32.mrb[0].mxu0
          %v2090 = vadd.f32 0.0, %v2089
          %v2091 = vpop.f32.mrb[0].mxu0
          %v2092 = vpop.f32.mrb[0].mxu0
          %v2093 = vadd.f32 0.0, %v2092
          %v2094 = vpop.f32.mrb[0].mxu0
          %2095 = vmatprep.mubr.bf16.mxu0 0
          %2096 = vmatmul.mubr.bf16.gmra.mrb[0].mxu0 %v1960
          %v2097 = vpop.f32.mrb[0].mxu0
          %v2098 = vadd.f32 0.0, %v2097
          %v2099 = vpop.f32.mrb[0].mxu0
          %v2100 = vpop.f32.mrb[0].mxu0
          %v2101 = vadd.f32 0.0, %v2100
          %v2102 = vpop.f32.mrb[0].mxu0
          %2103 = vmatprep.mubr.bf16.mxu0 0
          %2104 = vmatmul.mubr.bf16.gmra.mrb[0].mxu0 %v1961
          %v2105 = vpop.f32.mrb[0].mxu0
          %v2106 = vadd.f32 0.0, %v2105
          %v2107 = vpop.f32.mrb[0].mxu0
          %v2108 = vpop.f32.mrb[0].mxu0
          %v2109 = vadd.f32 0.0, %v2108
          %v2110 = vpop.f32.mrb[0].mxu0
          %2111 = vmatprep.mubr.bf16.mxu0 0
          %2112 = vmatmul.mubr.bf16.gmra.mrb[0].mxu0 %v1962
          %v2113 = vpop.f32.mrb[0].mxu0
          %v2114 = vadd.f32 0.0, %v2113
          %v2115 = vpop.f32.mrb[0].mxu0
          %v2116 = vpop.f32.mrb[0].mxu0
          %v2117 = vadd.f32 0.0, %v2116
          %v2118 = vpop.f32.mrb[0].mxu0
          %2119 = vmatprep.mubr.bf16.mxu0 0
          %2120 = vmatmul.mubr.bf16.gmra.mrb[0].mxu0 %v1963
          %v2121 = vpop.f32.mrb[0].mxu0
          %v2122 = vadd.f32 0.0, %v2121
          %v2123 = vpop.f32.mrb[0].mxu0
          %v2124 = vpop.f32.mrb[0].mxu0
          %v2125 = vadd.f32 0.0, %v2124
          %v2126 = vpop.f32.mrb[0].mxu0
          %2127 = vmatprep.mubr.bf16.mxu0 0
          %2128 = vmatmul.mubr.bf16.gmra.mrb[0].mxu0 %v1964
          %v2129 = vpop.f32.mrb[0].mxu0
          %v2130 = vadd.f32 0.0, %v2129
          %v2131 = vpop.f32.mrb[0].mxu0
          %v2132 = vpop.f32.mrb[0].mxu0
          %v2133 = vadd.f32 0.0, %v2132
          %v2134 = vpop.f32.mrb[0].mxu0
          %2135 = vmatprep.mubr.bf16.mxu0 0
          %2136 = vmatmul.mubr.bf16.gmra.mrb[0].mxu0 %v1965
          %v2137 = vpop.f32.mrb[0].mxu0
          %v2138 = vadd.f32 0.0, %v2137
          %v2139 = vpop.f32.mrb[0].mxu0
          %v2140 = vpop.f32.mrb[0].mxu0
          %v2141 = vadd.f32 0.0, %v2140
          %v2142 = vpop.f32.mrb[0].mxu0
          %2143 = vdwg.mxu0
          %v2144 = vadd.f32 %v1967, %v2082
          %v2145 = vadd.f32 %v1968, %v2085
          %v2146 = vadd.f32 %v1969, %v2090
          %v2147 = vadd.f32 %v1970, %v2093
          %v2148 = vadd.f32 %v1971, %v2098
          %v2149 = vadd.f32 %v1972, %v2101
          %v2150 = vadd.f32 %v1973, %v2106
          %v2151 = vadd.f32 %v1974, %v2109
          %v2152 = vadd.f32 %v1975, %v2114
          %v2153 = vadd.f32 %v1976, %v2117
          %v2154 = vadd.f32 %v1977, %v2122
          %v2155 = vadd.f32 %v1978, %v2125
          %v2156 = vadd.f32 %v1979, %v2130
          %v2157 = vadd.f32 %v1980, %v2133
          %v2158 = vadd.f32 %v1981, %v2138
          %v2159 = vadd.f32 %v1982, %v2141
          %2160 = vst [vmem:[%s1966] sm:$0xff] %v2144
          %2161 = vst [vmem:[%s1966 + $0x8] sm:$0xff] %v2145
          %2162 = vst [vmem:[%s1966 + $0x10] sm:$0xff] %v2146
          %2163 = vst [vmem:[%s1966 + $0x18] sm:$0xff] %v2147
          %2164 = vst [vmem:[%s1966 + $0x20] sm:$0xff] %v2148
          %2165 = vst [vmem:[%s1966 + $0x28] sm:$0xff] %v2149
          %2166 = vst [vmem:[%s1966 + $0x30] sm:$0xff] %v2150
          %2167 = vst [vmem:[%s1966 + $0x38] sm:$0xff] %v2151
          %2168 = vst [vmem:[%s1966 + $0x40] sm:$0xff] %v2152
          %2169 = vst [vmem:[%s1966 + $0x48] sm:$0xff] %v2153
          %2170 = vst [vmem:[%s1966 + $0x50] sm:$0xff] %v2154
          %2171 = vst [vmem:[%s1966 + $0x58] sm:$0xff] %v2155
          %2172 = vst [vmem:[%s1966 + $0x60] sm:$0xff] %v2156
          %2173 = vst [vmem:[%s1966 + $0x68] sm:$0xff] %v2157
          %2174 = vst [vmem:[%s1966 + $0x70] sm:$0xff] %v2158
          %2175 = vst [vmem:[%s1966 + $0x78] sm:$0xff] %v2159
        $region80: #{_forward.1} parent=55 // pred_fallthru
          _
        // Predicated region
        $region81: #{_forward.1} parent=55 // pred_check
          %p2176 = pneg %p242
        $region82: #{_forward.1} parent=55 // pred_check_branch
          %2178 = sbr.rel (%p2176) target = $region84
        $region83: #{_forward.1} parent=55 // pred_region
          _
        $region84: #{_forward.1} parent=55 // pred_fallthru
          _
        // Predicated region
        $region85: #{_forward.1} parent=55 // pred_check
          %p2179 = pneg %p242
        $region86: #{_forward.1} parent=55 // pred_check_branch
          %2181 = sbr.rel (%p2179) target = $region88
        $region87: #{_forward.1} parent=55 // pred_region
          _
        $region88: #{_forward.1} parent=55 // pred_fallthru
          _
      $region56: #{_forward.1} parent=5 // pred_fallthru
        _
      %p2182 = scmp.le.s32.totalorder 2, %s18
      // Predicated region
      $region89: #{_forward.1} parent=5 // pred_check
        %p2183 = pneg %p2182
      $region90: #{_forward.1} parent=5 // pred_check_branch
        %2185 = sbr.rel (%p2183) target = $region92
      $region91: #{_forward.1} parent=5 // pred_region
        %s2186 = ssub.s32 %s18, 2
      $region92: #{_forward.1} parent=5 // pred_fallthru
        _
    $region6: #{_forward.1} parent=1 // loop_footer
      %s22 = sadd.s32 1, %s18
    $region7: #{_forward.1} parent=1 // loop_footer_branch
      %17 = sbr.rel target = $region3
    $region8: #{_forward.1} parent=1 // loop_exit
      _
    %2187 = vsyncpa [#allocation8], 1
    %s2188 = scalar_lea.sflag [#allocation8], 1
    %2189 = vsyncpa %s2188, 1
    %2190 = vsyncpa [#allocation10], 1
    %2191 = vsyncpa [#allocation13], 1

</llo_original>
